<compile_context>
chip_gen: v5e
topology: v5e:2x2
jax: 0.10.0
libtpu: 0.0.40
codegen_flags: <defaults>
</compile_context>

<pallas_src>
import jax
import jax.numpy as jnp
from jax import lax
from jax.experimental import pallas as pl
from jax.experimental.pallas import tpu as pltpu


def transe_kernel(e_idx_ref, l_idx_ref, t_idx_ref,   # (1, tile) int32 blocks
                  ee_t_ref, el_t_ref,                # (D, nentity)/(D, nrel) f32
                  out_ref):                          # (1, tile) f32 block
    """d[b] = sum_d |Ee[e[b]] + El[l[b]] - Ee[t[b]]| for one batch tile."""
    _, nentity = ee_t_ref.shape
    _, nrelation = el_t_ref.shape
    tile = out_ref.shape[1]

    e_idx = e_idx_ref[...]            # (1, tile)
    l_idx = l_idx_ref[...]
    t_idx = t_idx_ref[...]

    ent_iota = lax.broadcasted_iota(jnp.int32, (nentity, tile), 0)
    rel_iota = lax.broadcasted_iota(jnp.int32, (nrelation, tile), 0)

    # Signed one-hot for the entity table: +1 on row e[b], -1 on row t[b].
    # (If e[b] == t[b] the coefficient is 0, which is still correct since
    #  Ee[e] - Ee[t] == 0.)
    ent_coef = ((ent_iota == e_idx).astype(jnp.float32)
                - (ent_iota == t_idx).astype(jnp.float32))   # (nentity, tile)
    rel_coef = (rel_iota == l_idx).astype(jnp.float32)        # (nrelation, tile)

    # MXU gather + combine: (D, nentity) @ (nentity, tile) + (D, nrel) @ (nrel, tile)
    diff_t = (jnp.dot(ee_t_ref[...], ent_coef,
                      preferred_element_type=jnp.float32,
                      precision=lax.Precision.HIGHEST)
              + jnp.dot(el_t_ref[...], rel_coef,
                        preferred_element_type=jnp.float32,
                        precision=lax.Precision.HIGHEST))     # (D, tile)

    # Sublane reduction -> lane-dense (1, tile) row, single unmasked-ish store.
    out_ref[...] = jnp.sum(jnp.abs(diff_t), axis=0, keepdims=True)


def transe_forward(e, l, t, ee_table, el_table, *, tile=256):
    """e, l, t: int (B,); ee_table: (nentity, D) f32; el_table: (nrelation, D) f32."""
    nentity, d = ee_table.shape
    nrelation, d2 = el_table.shape
    assert d == d2
    assert tile % 128 == 0, "tile must be a multiple of 128 for lane-dense blocks"
    batch = e.shape[0]

    # Clamp indices (no OOB reads) and pad the batch to a tile multiple.
    # NOTE: clamping silently remaps out-of-range indices (PyTorch would raise).
    e = jnp.clip(e.astype(jnp.int32), 0, nentity - 1)
    l = jnp.clip(l.astype(jnp.int32), 0, nrelation - 1)
    t = jnp.clip(t.astype(jnp.int32), 0, nentity - 1)

    num_tiles = pl.cdiv(batch, tile)
    b_pad = num_tiles * tile
    pad = b_pad - batch
    if pad:
        e = jnp.pad(e, (0, pad))   # pads with index 0 (valid row)
        l = jnp.pad(l, (0, pad))
        t = jnp.pad(t, (0, pad))

    # Lane-dense index rows.
    e = e.reshape(1, b_pad)
    l = l.reshape(1, b_pad)
    t = t.reshape(1, b_pad)

    # Transposed tables so the MXU gather yields (D, tile) directly and the
    # final reduction lands lane-dense with no in-kernel transposes.
    ee_t = ee_table.astype(jnp.float32).T   # (D, nentity)
    el_t = el_table.astype(jnp.float32).T   # (D, nrelation)

    grid_spec = pltpu.PrefetchScalarGridSpec(
        num_scalar_prefetch=0,
        grid=(num_tiles,),
        in_specs=[
            pl.BlockSpec((1, tile), lambda i: (0, i)),          # e indices
            pl.BlockSpec((1, tile), lambda i: (0, i)),          # l indices
            pl.BlockSpec((1, tile), lambda i: (0, i)),          # t indices
            pl.BlockSpec((d, nentity), lambda i: (0, 0)),       # Ee^T (fetched once)
            pl.BlockSpec((d, nrelation), lambda i: (0, 0)),     # El^T (fetched once)
        ],
        out_specs=pl.BlockSpec((1, tile), lambda i: (0, i)),    # lane-dense output
    )

    # Generation-aware VMEM budget: count the default 2x input buffering and
    # cap below the physical capacity of the current chip (v5e/v6e: 128 MiB,
    # v7x: 64 MiB per core).
    table_bytes = 4 * (ee_t.size + el_t.size)
    block_bytes = 4 * (4 * tile)                 # 3 idx blocks + 1 out block
    vmem_needed = 2 * (table_bytes + block_bytes)
    try:
        vmem_cap = int(pltpu.get_tpu_info().vmem_capacity_bytes)
    except Exception:
        vmem_cap = 64 << 20                      # conservative fallback (v7x)
    vmem_limit = int(min(max(vmem_needed + (4 << 20), 16 << 20),
                         (3 * vmem_cap) // 4))

    out = pl.pallas_call(
        transe_kernel,
        out_shape=jax.ShapeDtypeStruct((1, b_pad), jnp.float32),
        grid_spec=grid_spec,
        compiler_params=pltpu.CompilerParams(
            dimension_semantics=("parallel",),   # batch tiles are independent
            vmem_limit_bytes=vmem_limit,
        ),
    )(e, l, t, ee_t, el_t)

    return out[0, :batch]


if __name__ == "__main__":
    # Module hyper-parameters (small, deterministic).
    nentity = 32
    nrelation = 8
    vector_dim = 128   # lane multiple for clean TPU layout
    batch = 300        # > one 256-row tile -> exercises multi-tile grid + padding

    key = jax.random.PRNGKey(0)
    k_ee, k_el, k_e, k_l, k_t = jax.random.split(key, 5)

    bound = 6.0 / (vector_dim ** 0.5)
    # Deterministic init matching nn.Embedding(...).uniform_(-b, b) shapes.
    Ee = jax.random.uniform(k_ee, (nentity, vector_dim), jnp.float32,
                            minval=-bound, maxval=bound)
    El = jax.random.uniform(k_el, (nrelation, vector_dim), jnp.float32,
                            minval=-bound, maxval=bound)

    e_idx = jax.random.randint(k_e, (batch,), 0, nentity, dtype=jnp.int32)
    l_idx = jax.random.randint(k_l, (batch,), 0, nrelation, dtype=jnp.int32)
    t_idx = jax.random.randint(k_t, (batch,), 0, nentity, dtype=jnp.int32)

    d_out = transe_forward(e_idx, l_idx, t_idx, Ee, El)
    d_out = jax.block_until_ready(d_out)

    # Pure-JAX reference for correctness.
    d_ref = jnp.sum(jnp.abs(Ee[e_idx] + El[l_idx] - Ee[t_idx]), axis=1)
    assert d_out.shape == (batch,), d_out.shape
    assert jnp.allclose(d_out, d_ref, rtol=1e-5, atol=1e-4), (
        float(jnp.max(jnp.abs(d_out - d_ref))))

    print("KERNEL_OK")
</pallas_src>

<mosaic_0001>
module attributes {stable_mosaic.version = 11 : i64} {
  func.func @transe_kernel(%arg0: i32, %arg1: memref<1x256xi32, #tpu.memory_space<vmem>>, %arg2: memref<1x256xi32, #tpu.memory_space<vmem>>, %arg3: memref<1x256xi32, #tpu.memory_space<vmem>>, %arg4: memref<128x32xf32, #tpu.memory_space<vmem>>, %arg5: memref<128x8xf32, #tpu.memory_space<vmem>>, %arg6: memref<1x256xf32, #tpu.memory_space<vmem>>) attributes {dimension_semantics = [#tpu.dimension_semantics<parallel>], iteration_bounds = array<i64: 2>, scalar_prefetch = 0 : i64, scratch_operands = 0 : i64, tpu.core_type = #tpu.core_type<tc>, window_params = [{transform_indices = @transform_0, window_bounds = array<i64: 1, 256>}, {transform_indices = @transform_1, window_bounds = array<i64: 1, 256>}, {transform_indices = @transform_2, window_bounds = array<i64: 1, 256>}, {pipeline_mode = #tpu.pipeline_mode<synchronous>, transform_indices = @transform_3, window_bounds = array<i64: 128, 32>}, {pipeline_mode = #tpu.pipeline_mode<synchronous>, transform_indices = @transform_4, window_bounds = array<i64: 128, 8>}, {transform_indices = @transform_5, window_bounds = array<i64: 1, 256>}]} {
    %c0 = arith.constant 0 : index
    %c0_0 = arith.constant 0 : index
    %0 = vector.load %arg1[%c0, %c0_0] : memref<1x256xi32, #tpu.memory_space<vmem>>, vector<1x256xi32>
    %c0_1 = arith.constant 0 : index
    %c0_2 = arith.constant 0 : index
    %1 = vector.load %arg2[%c0_1, %c0_2] : memref<1x256xi32, #tpu.memory_space<vmem>>, vector<1x256xi32>
    %c0_3 = arith.constant 0 : index
    %c0_4 = arith.constant 0 : index
    %2 = vector.load %arg3[%c0_3, %c0_4] : memref<1x256xi32, #tpu.memory_space<vmem>>, vector<1x256xi32>
    %3 = tpu.iota {dimensions = array<i32: 0>} : vector<32x256xi32>
    %4 = tpu.iota {dimensions = array<i32: 0>} : vector<8x256xi32>
    %5 = vector.broadcast %0 : vector<1x256xi32> to vector<32x256xi32>
    %6 = arith.cmpi eq, %3, %5 : vector<32x256xi32>
    %7 = arith.extui %6 : vector<32x256xi1> to vector<32x256xi32>
    %8 = arith.sitofp %7 : vector<32x256xi32> to vector<32x256xf32>
    %9 = vector.broadcast %2 : vector<1x256xi32> to vector<32x256xi32>
    %10 = arith.cmpi eq, %3, %9 : vector<32x256xi32>
    %11 = arith.extui %10 : vector<32x256xi1> to vector<32x256xi32>
    %12 = arith.sitofp %11 : vector<32x256xi32> to vector<32x256xf32>
    %13 = arith.subf %8, %12 : vector<32x256xf32>
    %14 = vector.broadcast %1 : vector<1x256xi32> to vector<8x256xi32>
    %15 = arith.cmpi eq, %4, %14 : vector<8x256xi32>
    %16 = arith.extui %15 : vector<8x256xi1> to vector<8x256xi32>
    %17 = arith.sitofp %16 : vector<8x256xi32> to vector<8x256xf32>
    %c0_5 = arith.constant 0 : index
    %c0_6 = arith.constant 0 : index
    %18 = vector.load %arg4[%c0_5, %c0_6] : memref<128x32xf32, #tpu.memory_space<vmem>>, vector<128x32xf32>
    %cst = arith.constant dense<0.000000e+00> : vector<128x256xf32>
    %19 = tpu.matmul %18, %13, %cst {dimension_numbers = #tpu.dot_dimension_numbers<[1], [0], [0], [1], [0, 0, 1, 1], [], []>, precision = #tpu.contract_precision<fp32>} : vector<128x32xf32>, vector<32x256xf32>, vector<128x256xf32> -> vector<128x256xf32>
    %c0_7 = arith.constant 0 : index
    %c0_8 = arith.constant 0 : index
    %20 = vector.load %arg5[%c0_7, %c0_8] : memref<128x8xf32, #tpu.memory_space<vmem>>, vector<128x8xf32>
    %cst_9 = arith.constant dense<0.000000e+00> : vector<128x256xf32>
    %21 = tpu.matmul %20, %17, %cst_9 {dimension_numbers = #tpu.dot_dimension_numbers<[1], [0], [0], [1], [0, 0, 1, 1], [], []>, precision = #tpu.contract_precision<fp32>} : vector<128x8xf32>, vector<8x256xf32>, vector<128x256xf32> -> vector<128x256xf32>
    %22 = arith.addf %19, %21 : vector<128x256xf32>
    %23 = math.absf %22 : vector<128x256xf32>
    %cst_10 = arith.constant dense<0.000000e+00> : vector<256xf32>
    %24 = vector.multi_reduction <add>, %23, %cst_10 [0] : vector<128x256xf32> to vector<256xf32>
    %25 = vector.shape_cast %24 : vector<256xf32> to vector<1x256xf32>
    %c0_11 = arith.constant 0 : index
    %c0_12 = arith.constant 0 : index
    %26 = vector.load %arg6[%c0_11, %c0_12] : memref<1x256xf32, #tpu.memory_space<vmem>>, vector<1x256xf32>
    tpu.vector_store %arg6[%c0_11, %c0_12], %25 {strides = array<i32>} : memref<1x256xf32, #tpu.memory_space<vmem>>, vector<1x256xf32>,
    return
  }
  func.func @transform_0(%arg0: i32) -> (i32, i32) {
    %c0_i32 = arith.constant 0 : i32
    %c0_i32_0 = arith.constant 0 : i32
    return %c0_i32, %arg0 : i32, i32
  }
  func.func @transform_1(%arg0: i32) -> (i32, i32) {
    %c0_i32 = arith.constant 0 : i32
    %c0_i32_0 = arith.constant 0 : i32
    return %c0_i32, %arg0 : i32, i32
  }
  func.func @transform_2(%arg0: i32) -> (i32, i32) {
    %c0_i32 = arith.constant 0 : i32
    %c0_i32_0 = arith.constant 0 : i32
    return %c0_i32, %arg0 : i32, i32
  }
  func.func @transform_3(%arg0: i32) -> (i32, i32) {
    %c0_i32 = arith.constant 0 : i32
    %c0_i32_0 = arith.constant 0 : i32
    %c0_i32_1 = arith.constant 0 : i32
    return %c0_i32, %c0_i32_0 : i32, i32
  }
  func.func @transform_4(%arg0: i32) -> (i32, i32) {
    %c0_i32 = arith.constant 0 : i32
    %c0_i32_0 = arith.constant 0 : i32
    %c0_i32_1 = arith.constant 0 : i32
    return %c0_i32, %c0_i32_0 : i32, i32
  }
  func.func @transform_5(%arg0: i32) -> (i32, i32) {
    %c0_i32 = arith.constant 0 : i32
    %c0_i32_0 = arith.constant 0 : i32
    return %c0_i32, %arg0 : i32, i32
  }
}

</mosaic_0001>

<llo_original>
// kernel: tpu_custom_call.1
$region0: #{tpu_custom_call.1}
  #allocation0 [shape = 'u32[]', space=smem, size = 0x4, offset = 0x4, fixed_abs, tag = 'smem constant byte address 0x4 - core index']
  #allocation1 [shape = 'u32[72,128]{1,0:T(1,128)}', space=vmem, size = 0x9000, scoped, tag = 'internal scratch']
  %s0 = inlined_call_operand.vmem [shape: s32[1,512], index: 0, kind: input, shape index: {}]
  %s1 = inlined_call_operand.vmem [shape: s32[1,512], index: 1, kind: input, shape index: {}]
  %s2 = inlined_call_operand.vmem [shape: s32[1,512], index: 2, kind: input, shape index: {}]
  %s3 = inlined_call_operand.vmem [shape: f32[128,32], index: 3, kind: input, shape index: {}]
  %s4 = inlined_call_operand.vmem [shape: f32[128,8], index: 4, kind: input, shape index: {}]
  %s5 = inlined_call_operand.hbm [shape: f32[1,512], index: 5, kind: output, shape index: {}]
  %s6 = sld [smem:[#allocation0]]
  $region53: #{tpu_custom_call.1} parent=0
    _
  %s8 = ssub.s32 1, %s6
  %s9 = scalar_select 0, %s8, %s6
  $region1: #{tpu_custom_call.1} parent=0
    #allocation2 [shape = 'u8[2048]{0}', space=vmem, size = 0x800, scoped, tag = 'output window, operand 0']
    #allocation3 [shape = 's32[2]{0}', space=sflag, size = 0x8, scoped, tag = 'scoped memory for tpu_custom_call.1']
    %10 = vsyncpa [#allocation3], 0
    %s11 = scalar_lea.sflag [#allocation3], 1
    %12 = vsyncpa %s11, 0
    loop: start=0, step=1, limit=4
    $region2: #{tpu_custom_call.1} parent=1 // loop_pre_header
      _
    $region3: #{tpu_custom_call.1} parent=1 // loop_header
      %s14 = sphi 0, %s18
      %p15 = scmp.ge.s32.totalorder %s14, 4
      %s24 = sphi 0, %s26
      %s27 = sphi 0, %s24
      %s28 = sphi 0, %s27
      %s44 = sphi 0, %s28
      %s50 = sphi 0, %s52
      %s53 = sphi 0, %s50
      %s54 = sphi 0, %s53
      %s70 = sphi 0, %s54
      %s76 = sphi 0, %s78
      %s79 = sphi 0, %s76
      %s80 = sphi 0, %s79
      %s96 = sphi 0, %s80
      %s100 = sphi 0, %s100
      %s102 = sphi 0, %s100
      %s103 = sphi 0, %s102
      %s117 = sphi 0, %s103
      %s121 = sphi 0, %s121
      %s123 = sphi 0, %s121
      %s124 = sphi 0, %s123
      %s138 = sphi 0, %s124
      %s144 = sphi 0, %s146
      %s147 = sphi 0, %s144
      %s148 = sphi 0, %s147
      %s164 = sphi 0, %s148
    $region4: #{tpu_custom_call.1} parent=1 // loop_header_branch
      %17 = sbr.rel (%p15) target = $region8
    $region5: #{tpu_custom_call.1} parent=1 // loop_body
      %s19 = ssub.s32 %s14, 1
      %s20 = ssub.s32 %s14, 2
      %s21 = sadd.s32 %s14, 1
      %s22 = ssub.s32 %s14, %s21
      %p23 = scmp.eq.s32.totalorder %s22, 0
      %s25 = sadd.s32 %s24, 1
      %s26 = scalar_select %p23, %s24, %s25
      %p29 = pneg %p23
      %p30 = scmp.eq.s32.totalorder %s14, 1
      %p31 = por %p29, %p30
      %p32 = scmp.ne.s32.totalorder %s24, %s27
      %p33 = scmp.eq.s32.totalorder %s14, 0
      %p34 = por %p32, %p33
      %p35 = scmp.ne.s32.totalorder %s24, %s27
      %p36 = scmp.eq.s32.totalorder %s19, 1
      %p37 = por %p35, %p36
      %p38 = scmp.ne.s32.totalorder %s27, %s28
      %p39 = scmp.eq.s32.totalorder %s19, 0
      %p40 = por %p38, %p39
      %p41 = scmp.ne.s32.totalorder %s27, %s28
      %p42 = scmp.eq.s32.totalorder %s20, 1
      %p43 = por %p41, %p42
      %p45 = scmp.ne.s32.totalorder %s28, %s44
      %p46 = scmp.eq.s32.totalorder %s20, 0
      %p47 = por %p45, %p46
      %s48 = ssub.s32 %s14, %s21
      %p49 = scmp.eq.s32.totalorder %s48, 0
      %s51 = sadd.s32 %s50, 1
      %s52 = scalar_select %p49, %s50, %s51
      %p55 = pneg %p49
      %p56 = scmp.eq.s32.totalorder %s14, 1
      %p57 = por %p55, %p56
      %p58 = scmp.ne.s32.totalorder %s50, %s53
      %p59 = scmp.eq.s32.totalorder %s14, 0
      %p60 = por %p58, %p59
      %p61 = scmp.ne.s32.totalorder %s50, %s53
      %p62 = scmp.eq.s32.totalorder %s19, 1
      %p63 = por %p61, %p62
      %p64 = scmp.ne.s32.totalorder %s53, %s54
      %p65 = scmp.eq.s32.totalorder %s19, 0
      %p66 = por %p64, %p65
      %p67 = scmp.ne.s32.totalorder %s53, %s54
      %p68 = scmp.eq.s32.totalorder %s20, 1
      %p69 = por %p67, %p68
      %p71 = scmp.ne.s32.totalorder %s54, %s70
      %p72 = scmp.eq.s32.totalorder %s20, 0
      %p73 = por %p71, %p72
      %s74 = ssub.s32 %s14, %s21
      %p75 = scmp.eq.s32.totalorder %s74, 0
      %s77 = sadd.s32 %s76, 1
      %s78 = scalar_select %p75, %s76, %s77
      %p81 = pneg %p75
      %p82 = scmp.eq.s32.totalorder %s14, 1
      %p83 = por %p81, %p82
      %p84 = scmp.ne.s32.totalorder %s76, %s79
      %p85 = scmp.eq.s32.totalorder %s14, 0
      %p86 = por %p84, %p85
      %p87 = scmp.ne.s32.totalorder %s76, %s79
      %p88 = scmp.eq.s32.totalorder %s19, 1
      %p89 = por %p87, %p88
      %p90 = scmp.ne.s32.totalorder %s79, %s80
      %p91 = scmp.eq.s32.totalorder %s19, 0
      %p92 = por %p90, %p91
      %p93 = scmp.ne.s32.totalorder %s79, %s80
      %p94 = scmp.eq.s32.totalorder %s20, 1
      %p95 = por %p93, %p94
      %p97 = scmp.ne.s32.totalorder %s80, %s96
      %p98 = scmp.eq.s32.totalorder %s20, 0
      %p99 = por %p97, %p98
      %s101 = sadd.s32 %s100, 1
      %p104 = scmp.eq.s32.totalorder %s14, 1
      %p105 = scmp.ne.s32.totalorder %s100, %s102
      %p106 = scmp.eq.s32.totalorder %s14, 0
      %p107 = por %p105, %p106
      %p108 = scmp.ne.s32.totalorder %s100, %s102
      %p109 = scmp.eq.s32.totalorder %s19, 1
      %p110 = por %p108, %p109
      %p111 = scmp.ne.s32.totalorder %s102, %s103
      %p112 = scmp.eq.s32.totalorder %s19, 0
      %p113 = por %p111, %p112
      %p114 = scmp.ne.s32.totalorder %s102, %s103
      %p115 = scmp.eq.s32.totalorder %s20, 1
      %p116 = por %p114, %p115
      %p118 = scmp.ne.s32.totalorder %s103, %s117
      %p119 = scmp.eq.s32.totalorder %s20, 0
      %p120 = por %p118, %p119
      %s122 = sadd.s32 %s121, 1
      %p125 = scmp.eq.s32.totalorder %s14, 1
      %p126 = scmp.ne.s32.totalorder %s121, %s123
      %p127 = scmp.eq.s32.totalorder %s14, 0
      %p128 = por %p126, %p127
      %p129 = scmp.ne.s32.totalorder %s121, %s123
      %p130 = scmp.eq.s32.totalorder %s19, 1
      %p131 = por %p129, %p130
      %p132 = scmp.ne.s32.totalorder %s123, %s124
      %p133 = scmp.eq.s32.totalorder %s19, 0
      %p134 = por %p132, %p133
      %p135 = scmp.ne.s32.totalorder %s123, %s124
      %p136 = scmp.eq.s32.totalorder %s20, 1
      %p137 = por %p135, %p136
      %p139 = scmp.ne.s32.totalorder %s124, %s138
      %p140 = scmp.eq.s32.totalorder %s20, 0
      %p141 = por %p139, %p140
      %s142 = ssub.s32 %s14, %s21
      %p143 = scmp.eq.s32.totalorder %s142, 0
      %s145 = sadd.s32 %s144, 1
      %s146 = scalar_select %p143, %s144, %s145
      %p149 = pneg %p143
      %p150 = scmp.eq.s32.totalorder %s14, 1
      %p151 = por %p149, %p150
      %p152 = scmp.ne.s32.totalorder %s144, %s147
      %p153 = scmp.eq.s32.totalorder %s14, 0
      %p154 = por %p152, %p153
      %p155 = scmp.ne.s32.totalorder %s144, %s147
      %p156 = scmp.eq.s32.totalorder %s19, 1
      %p157 = por %p155, %p156
      %p158 = scmp.ne.s32.totalorder %s147, %s148
      %p159 = scmp.eq.s32.totalorder %s19, 0
      %p160 = por %p158, %p159
      %p161 = scmp.ne.s32.totalorder %s147, %s148
      %p162 = scmp.eq.s32.totalorder %s20, 1
      %p163 = por %p161, %p162
      %p165 = scmp.ne.s32.totalorder %s148, %s164
      %p166 = scmp.eq.s32.totalorder %s20, 0
      %p167 = por %p165, %p166
      %p168 = scmp.le.s32.totalorder 1, %s14
      %p169 = scmp.lt.s32.totalorder %s14, 3
      %p170 = pnand %p168, %p169
      %p171 = pneg %p170
      // Predicated region
      $region9: #{tpu_custom_call.1} parent=5 // pred_check
        _
      $region10: #{tpu_custom_call.1} parent=5 // pred_check_branch
        %173 = sbr.rel (%p170) target = $region12
      $region11: #{tpu_custom_call.1} parent=5 // pred_region
        %s174 = ssub.s32 %s14, 1
        // Predicated region
        $region13: #{tpu_custom_call.1} parent=11 // pred_check
          %p175 = pneg %p113
        $region14: #{tpu_custom_call.1} parent=11 // pred_check_branch
          %177 = sbr.rel (%p175) target = $region16
        $region15: #{tpu_custom_call.1} parent=11 // pred_region
          _
        $region16: #{tpu_custom_call.1} parent=11 // pred_fallthru
          _
        // Predicated region
        $region17: #{tpu_custom_call.1} parent=11 // pred_check
          %p178 = pneg %p134
        $region18: #{tpu_custom_call.1} parent=11 // pred_check_branch
          %180 = sbr.rel (%p178) target = $region20
        $region19: #{tpu_custom_call.1} parent=11 // pred_region
          _
        $region20: #{tpu_custom_call.1} parent=11 // pred_fallthru
          _
      $region12: #{tpu_custom_call.1} parent=5 // pred_fallthru
        _
      %p181 = scmp.lt.s32.totalorder %s14, 2
      // Predicated region
      $region21: #{tpu_custom_call.1} parent=5 // pred_check
        %p182 = pneg %p181
      $region22: #{tpu_custom_call.1} parent=5 // pred_check_branch
        %184 = sbr.rel (%p182) target = $region24
      $region23: #{tpu_custom_call.1} parent=5 // pred_region
        // Predicated region
        $region25: #{tpu_custom_call.1} parent=23 // pred_check
          %p185 = pneg %p34
        $region26: #{tpu_custom_call.1} parent=23 // pred_check_branch
          %187 = sbr.rel (%p185) target = $region28
        $region27: #{tpu_custom_call.1} parent=23 // pred_region
          %s188 = smul.u32 2, %s14
          %p189 = scmp.lt.s32.totalorder %s188, 3
          %s190 = scalar_select %p189, %s188, 3
          %s191 = scalar_lea.vmem %s0, %s190
          %s192 = smul.u32 2, %s14
        $region28: #{tpu_custom_call.1} parent=23 // pred_fallthru
          _
        // Predicated region
        $region29: #{tpu_custom_call.1} parent=23 // pred_check
          %p193 = pneg %p60
        $region30: #{tpu_custom_call.1} parent=23 // pred_check_branch
          %195 = sbr.rel (%p193) target = $region32
        $region31: #{tpu_custom_call.1} parent=23 // pred_region
          %s196 = smul.u32 2, %s14
          %p197 = scmp.lt.s32.totalorder %s196, 3
          %s198 = scalar_select %p197, %s196, 3
          %s199 = scalar_lea.vmem %s1, %s198
          %s200 = smul.u32 2, %s14
        $region32: #{tpu_custom_call.1} parent=23 // pred_fallthru
          _
        // Predicated region
        $region33: #{tpu_custom_call.1} parent=23 // pred_check
          %p201 = pneg %p86
        $region34: #{tpu_custom_call.1} parent=23 // pred_check_branch
          %203 = sbr.rel (%p201) target = $region36
        $region35: #{tpu_custom_call.1} parent=23 // pred_region
          %s204 = smul.u32 2, %s14
          %p205 = scmp.lt.s32.totalorder %s204, 3
          %s206 = scalar_select %p205, %s204, 3
          %s207 = scalar_lea.vmem %s2, %s206
          %s208 = smul.u32 2, %s14
        $region36: #{tpu_custom_call.1} parent=23 // pred_fallthru
          _
      $region24: #{tpu_custom_call.1} parent=5 // pred_fallthru
        _
      %p209 = scmp.le.s32.totalorder 1, %s14
      %p210 = scmp.lt.s32.totalorder %s14, 3
      %p211 = pnand %p209, %p210
      %p212 = pneg %p211
      // Predicated region
      $region37: #{tpu_custom_call.1} parent=5 // pred_check
        _
      $region38: #{tpu_custom_call.1} parent=5 // pred_check_branch
        %214 = sbr.rel (%p211) target = $region40
      $region39: #{tpu_custom_call.1} parent=5 // pred_region
        %s215 = ssub.s32 %s14, 1
        %s216 = smul.u32 2, %s19
        %p217 = scmp.lt.s32.totalorder %s216, 3
        %s218 = scalar_select %p217, %s216, 3
        %s219 = scalar_lea.vmem %s0, %s218
        %p220 = pneg %p40
        %p221 = pneg %p37
        %s222 = smul.u32 2, %s19
        %p223 = scmp.lt.s32.totalorder %s222, 3
        %s224 = scalar_select %p223, %s222, 3
        %s225 = scalar_lea.vmem %s1, %s224
        %p226 = pneg %p66
        %p227 = pneg %p63
        %s228 = smul.u32 2, %s19
        %p229 = scmp.lt.s32.totalorder %s228, 3
        %s230 = scalar_select %p229, %s228, 3
        %s231 = scalar_lea.vmem %s2, %s230
        %p232 = pneg %p92
        %p233 = pneg %p89
        %p234 = pneg %p113
        %p235 = pneg %p110
        %p236 = pneg %p134
        %p237 = pneg %p131
        %p238 = pneg %p160
        %p239 = pneg %p157
        %s240 = sand.u32 %s147, 1
        %s241 = scalar_lea.sflag [#allocation3], %s240
        %s242 = sand.u32 %s147, 1
        %s243 = smul.addr %s242, 2
        %s244 = scalar_lea.vmem [#allocation2], %s243
        %s245 = smul.u32 2, %s19
        %p246 = scmp.lt.s32.totalorder %s245, 3
        %s247 = scalar_select %p246, %s245, 3
        %s248 = scalar_lea.vmem %s0, %s247
        %s249 = smul.u32 2, %s19
        %s250 = smul.u32 2, %s19
        %p251 = scmp.lt.s32.totalorder %s250, 3
        %s252 = scalar_select %p251, %s250, 3
        %s253 = scalar_lea.vmem %s1, %s252
        %s254 = smul.u32 2, %s19
        %s255 = smul.u32 2, %s19
        %p256 = scmp.lt.s32.totalorder %s255, 3
        %s257 = scalar_select %p256, %s255, 3
        %s258 = scalar_lea.vmem %s2, %s257
        %s259 = smul.u32 2, %s19
        %s260 = smul.u32 2, %s19
        %v261 = vld [vmem:[%s248] sm:$0x3]
        %v262 = vld [vmem:[%s253] sm:$0x3]
        %v263 = vld [vmem:[%s258] sm:$0x3]
        %v264 = vlaneseq
        %v265 = vshrl.u32 %v264, 7
        %v266 = vadd.s32 %v265, 8
        %v267 = vadd.s32 %v265, 16
        %v268 = vadd.s32 %v265, 24
        %v269 = vperm.slane %v261, 0
        %v270 = vperm.slane %v261, 1
        %vm271 = vcmp.eq.s32.totalorder %v265, %v269
        %vm272 = vcmp.eq.s32.totalorder %v265, %v270
        %vm273 = vcmp.eq.s32.totalorder %v266, %v269
        %vm274 = vcmp.eq.s32.totalorder %v266, %v270
        %vm275 = vcmp.eq.s32.totalorder %v267, %v269
        %vm276 = vcmp.eq.s32.totalorder %v267, %v270
        %vm277 = vcmp.eq.s32.totalorder %v268, %v269
        %vm278 = vcmp.eq.s32.totalorder %v268, %v270
        %v279 = vsel %vm271, 1, 0
        %v280 = vsel %vm272, 1, 0
        %v281 = vsel %vm273, 1, 0
        %v282 = vsel %vm274, 1, 0
        %v283 = vsel %vm275, 1, 0
        %v284 = vsel %vm276, 1, 0
        %v285 = vsel %vm277, 1, 0
        %v286 = vsel %vm278, 1, 0
        %v287 = vcvt.s32.f32 %v279
        %v288 = vcvt.s32.f32 %v280
        %v289 = vcvt.s32.f32 %v281
        %v290 = vcvt.s32.f32 %v282
        %v291 = vcvt.s32.f32 %v283
        %v292 = vcvt.s32.f32 %v284
        %v293 = vcvt.s32.f32 %v285
        %v294 = vcvt.s32.f32 %v286
        %v295 = vperm.slane %v263, 0
        %v296 = vperm.slane %v263, 1
        %vm297 = vcmp.eq.s32.totalorder %v265, %v295
        %vm298 = vcmp.eq.s32.totalorder %v265, %v296
        %vm299 = vcmp.eq.s32.totalorder %v266, %v295
        %vm300 = vcmp.eq.s32.totalorder %v266, %v296
        %vm301 = vcmp.eq.s32.totalorder %v267, %v295
        %vm302 = vcmp.eq.s32.totalorder %v267, %v296
        %vm303 = vcmp.eq.s32.totalorder %v268, %v295
        %vm304 = vcmp.eq.s32.totalorder %v268, %v296
        %v305 = vsel %vm297, 1, 0
        %v306 = vsel %vm298, 1, 0
        %v307 = vsel %vm299, 1, 0
        %v308 = vsel %vm300, 1, 0
        %v309 = vsel %vm301, 1, 0
        %v310 = vsel %vm302, 1, 0
        %v311 = vsel %vm303, 1, 0
        %v312 = vsel %vm304, 1, 0
        %v313 = vcvt.s32.f32 %v305
        %v314 = vcvt.s32.f32 %v306
        %v315 = vcvt.s32.f32 %v307
        %v316 = vcvt.s32.f32 %v308
        %v317 = vcvt.s32.f32 %v309
        %v318 = vcvt.s32.f32 %v310
        %v319 = vcvt.s32.f32 %v311
        %v320 = vcvt.s32.f32 %v312
        %v321 = vsub.f32 %v287, %v313
        %v322 = vsub.f32 %v288, %v314
        %v323 = vsub.f32 %v289, %v315
        %v324 = vsub.f32 %v290, %v316
        %v325 = vsub.f32 %v291, %v317
        %v326 = vsub.f32 %v292, %v318
        %v327 = vsub.f32 %v293, %v319
        %v328 = vsub.f32 %v294, %v320
        %v329 = vperm.slane %v262, 0
        %v330 = vperm.slane %v262, 1
        %vm331 = vcmp.eq.s32.totalorder %v265, %v329
        %vm332 = vcmp.eq.s32.totalorder %v265, %v330
        %v333 = vsel %vm331, 1, 0
        %v334 = vsel %vm332, 1, 0
        %v335 = vcvt.s32.f32 %v333
        %v336 = vcvt.s32.f32 %v334
        %v337 = vld [vmem:[%s3] sm:$0xff]
        %v338 = vld [vmem:[%s3 + $0x8] sm:$0xff]
        %v339 = vld [vmem:[%s3 + $0x10] sm:$0xff]
        %v340 = vld [vmem:[%s3 + $0x18] sm:$0xff]
        %v341 = vld [vmem:[%s3 + $0x20] sm:$0xff]
        %v342 = vld [vmem:[%s3 + $0x28] sm:$0xff]
        %v343 = vld [vmem:[%s3 + $0x30] sm:$0xff]
        %v344 = vld [vmem:[%s3 + $0x38] sm:$0xff]
        %v345 = vld [vmem:[%s3 + $0x40] sm:$0xff]
        %v346 = vld [vmem:[%s3 + $0x48] sm:$0xff]
        %v347 = vld [vmem:[%s3 + $0x50] sm:$0xff]
        %v348 = vld [vmem:[%s3 + $0x58] sm:$0xff]
        %v349 = vld [vmem:[%s3 + $0x60] sm:$0xff]
        %v350 = vld [vmem:[%s3 + $0x68] sm:$0xff]
        %v351 = vld [vmem:[%s3 + $0x70] sm:$0xff]
        %v352 = vld [vmem:[%s3 + $0x78] sm:$0xff]
        %v353 = vld [vmem:[%s4] sm:$0xff]
        %v354 = vld [vmem:[%s4 + $0x8] sm:$0xff]
        %v355 = vld [vmem:[%s4 + $0x10] sm:$0xff]
        %v356 = vld [vmem:[%s4 + $0x18] sm:$0xff]
        %v357 = vld [vmem:[%s4 + $0x20] sm:$0xff]
        %v358 = vld [vmem:[%s4 + $0x28] sm:$0xff]
        %v359 = vld [vmem:[%s4 + $0x30] sm:$0xff]
        %v360 = vld [vmem:[%s4 + $0x38] sm:$0xff]
        %v361 = vld [vmem:[%s4 + $0x40] sm:$0xff]
        %v362 = vld [vmem:[%s4 + $0x48] sm:$0xff]
        %v363 = vld [vmem:[%s4 + $0x50] sm:$0xff]
        %v364 = vld [vmem:[%s4 + $0x58] sm:$0xff]
        %v365 = vld [vmem:[%s4 + $0x60] sm:$0xff]
        %v366 = vld [vmem:[%s4 + $0x68] sm:$0xff]
        %v367 = vld [vmem:[%s4 + $0x70] sm:$0xff]
        %v368 = vld [vmem:[%s4 + $0x78] sm:$0xff]
        %vm369 = vcmask 64512
        %v371 = vsel %vm369, %v353, 0
        %v374 = vsel %vm369, %v354, 0
        %v377 = vsel %vm369, %v355, 0
        %v380 = vsel %vm369, %v356, 0
        %v383 = vsel %vm369, %v357, 0
        %v386 = vsel %vm369, %v358, 0
        %v389 = vsel %vm369, %v359, 0
        %v392 = vsel %vm369, %v360, 0
        %v395 = vsel %vm369, %v361, 0
        %v398 = vsel %vm369, %v362, 0
        %v401 = vsel %vm369, %v363, 0
        %v404 = vsel %vm369, %v364, 0
        %v407 = vsel %vm369, %v365, 0
        %v410 = vsel %vm369, %v366, 0
        %v413 = vsel %vm369, %v367, 0
        %v416 = vsel %vm369, %v368, 0
        %418 = vmatpush.msra.mxu0 0.0
        %419 = vmatpush.msra.mxu0 0.0
        %420 = vmatpush.msra.mxu0 0.0
        %421 = vmatpush.msra.mxu0 0.0
        %422 = vmatpush.msra.mxu0 0.0
        %423 = vmatpush.msra.mxu0 0.0
        %424 = vmatpush.msra.mxu0 0.0
        %425 = vmatpush.msra.mxu0 0.0
        %426 = vmatpush.msra.mxu0 0.0
        %427 = vmatpush.msra.mxu0 0.0
        %428 = vmatpush.msra.mxu0 0.0
        %429 = vmatpush.msra.mxu0 0.0
        %430 = vmatpush.msra.mxu0 0.0
        %431 = vmatpush.msra.mxu0 0.0
        %432 = vmatpush.msra.mxu0 0.0
        %v433 = vand.u32 %v335, 4294901760
        %434 = vmatpush.msra.mxu0 %v433
        %v435 = vand.u32 %v371, 4294901760
        %v436 = vsub.f32 %v371, %v435
        %v437 = vand.u32 %v436, 4294901760
        %v438 = vsub.f32 %v436, %v437
        %v439 = vand.u32 %v438, 4294901760
        %440 = vmatmul.f32.gmra.mxu0 %v439
        %v441 = vpop.f32.mrf.mxu0
        %v442 = vadd.f32 0.0, %v441
        %v443 = vand.u32 %v374, 4294901760
        %v444 = vsub.f32 %v374, %v443
        %v445 = vand.u32 %v444, 4294901760
        %v446 = vsub.f32 %v444, %v445
        %v447 = vand.u32 %v446, 4294901760
        %448 = vmatmul.f32.gmra.mxu0 %v447
        %v449 = vpop.f32.mrf.mxu0
        %v450 = vadd.f32 0.0, %v449
        %v451 = vand.u32 %v377, 4294901760
        %v452 = vsub.f32 %v377, %v451
        %v453 = vand.u32 %v452, 4294901760
        %v454 = vsub.f32 %v452, %v453
        %v455 = vand.u32 %v454, 4294901760
        %456 = vmatmul.f32.gmra.mxu0 %v455
        %v457 = vpop.f32.mrf.mxu0
        %v458 = vadd.f32 0.0, %v457
        %v459 = vand.u32 %v380, 4294901760
        %v460 = vsub.f32 %v380, %v459
        %v461 = vand.u32 %v460, 4294901760
        %v462 = vsub.f32 %v460, %v461
        %v463 = vand.u32 %v462, 4294901760
        %464 = vmatmul.f32.gmra.mxu0 %v463
        %v465 = vpop.f32.mrf.mxu0
        %v466 = vadd.f32 0.0, %v465
        %v467 = vand.u32 %v383, 4294901760
        %v468 = vsub.f32 %v383, %v467
        %v469 = vand.u32 %v468, 4294901760
        %v470 = vsub.f32 %v468, %v469
        %v471 = vand.u32 %v470, 4294901760
        %472 = vmatmul.f32.gmra.mxu0 %v471
        %v473 = vpop.f32.mrf.mxu0
        %v474 = vadd.f32 0.0, %v473
        %v475 = vand.u32 %v386, 4294901760
        %v476 = vsub.f32 %v386, %v475
        %v477 = vand.u32 %v476, 4294901760
        %v478 = vsub.f32 %v476, %v477
        %v479 = vand.u32 %v478, 4294901760
        %480 = vmatmul.f32.gmra.mxu0 %v479
        %v481 = vpop.f32.mrf.mxu0
        %v482 = vadd.f32 0.0, %v481
        %v483 = vand.u32 %v389, 4294901760
        %v484 = vsub.f32 %v389, %v483
        %v485 = vand.u32 %v484, 4294901760
        %v486 = vsub.f32 %v484, %v485
        %v487 = vand.u32 %v486, 4294901760
        %488 = vmatmul.f32.gmra.mxu0 %v487
        %v489 = vpop.f32.mrf.mxu0
        %v490 = vadd.f32 0.0, %v489
        %v491 = vand.u32 %v392, 4294901760
        %v492 = vsub.f32 %v392, %v491
        %v493 = vand.u32 %v492, 4294901760
        %v494 = vsub.f32 %v492, %v493
        %v495 = vand.u32 %v494, 4294901760
        %496 = vmatmul.f32.gmra.mxu0 %v495
        %v497 = vpop.f32.mrf.mxu0
        %v498 = vadd.f32 0.0, %v497
        %v499 = vand.u32 %v395, 4294901760
        %v500 = vsub.f32 %v395, %v499
        %v501 = vand.u32 %v500, 4294901760
        %v502 = vsub.f32 %v500, %v501
        %v503 = vand.u32 %v502, 4294901760
        %504 = vmatmul.f32.gmra.mxu0 %v503
        %v505 = vpop.f32.mrf.mxu0
        %v506 = vadd.f32 0.0, %v505
        %v507 = vand.u32 %v398, 4294901760
        %v508 = vsub.f32 %v398, %v507
        %v509 = vand.u32 %v508, 4294901760
        %v510 = vsub.f32 %v508, %v509
        %v511 = vand.u32 %v510, 4294901760
        %512 = vmatmul.f32.gmra.mxu0 %v511
        %v513 = vpop.f32.mrf.mxu0
        %v514 = vadd.f32 0.0, %v513
        %v515 = vand.u32 %v401, 4294901760
        %v516 = vsub.f32 %v401, %v515
        %v517 = vand.u32 %v516, 4294901760
        %v518 = vsub.f32 %v516, %v517
        %v519 = vand.u32 %v518, 4294901760
        %520 = vmatmul.f32.gmra.mxu0 %v519
        %v521 = vpop.f32.mrf.mxu0
        %v522 = vadd.f32 0.0, %v521
        %v523 = vand.u32 %v404, 4294901760
        %v524 = vsub.f32 %v404, %v523
        %v525 = vand.u32 %v524, 4294901760
        %v526 = vsub.f32 %v524, %v525
        %v527 = vand.u32 %v526, 4294901760
        %528 = vmatmul.f32.gmra.mxu0 %v527
        %v529 = vpop.f32.mrf.mxu0
        %v530 = vadd.f32 0.0, %v529
        %v531 = vand.u32 %v407, 4294901760
        %v532 = vsub.f32 %v407, %v531
        %v533 = vand.u32 %v532, 4294901760
        %v534 = vsub.f32 %v532, %v533
        %v535 = vand.u32 %v534, 4294901760
        %536 = vmatmul.f32.gmra.mxu0 %v535
        %v537 = vpop.f32.mrf.mxu0
        %v538 = vadd.f32 0.0, %v537
        %v539 = vand.u32 %v410, 4294901760
        %v540 = vsub.f32 %v410, %v539
        %v541 = vand.u32 %v540, 4294901760
        %v542 = vsub.f32 %v540, %v541
        %v543 = vand.u32 %v542, 4294901760
        %544 = vmatmul.f32.gmra.mxu0 %v543
        %v545 = vpop.f32.mrf.mxu0
        %v546 = vadd.f32 0.0, %v545
        %v547 = vand.u32 %v413, 4294901760
        %v548 = vsub.f32 %v413, %v547
        %v549 = vand.u32 %v548, 4294901760
        %v550 = vsub.f32 %v548, %v549
        %v551 = vand.u32 %v550, 4294901760
        %552 = vmatmul.f32.gmra.mxu0 %v551
        %v553 = vpop.f32.mrf.mxu0
        %v554 = vadd.f32 0.0, %v553
        %v555 = vand.u32 %v416, 4294901760
        %v556 = vsub.f32 %v416, %v555
        %v557 = vand.u32 %v556, 4294901760
        %v558 = vsub.f32 %v556, %v557
        %v559 = vand.u32 %v558, 4294901760
        %560 = vmatmul.f32.gmra.mxu0 %v559
        %v561 = vpop.f32.mrf.mxu0
        %v562 = vadd.f32 0.0, %v561
        %563 = vdwg.mxu0
        %564 = vmatpush.msra.mxu0 0.0
        %565 = vmatpush.msra.mxu0 0.0
        %566 = vmatpush.msra.mxu0 0.0
        %567 = vmatpush.msra.mxu0 0.0
        %568 = vmatpush.msra.mxu0 0.0
        %569 = vmatpush.msra.mxu0 0.0
        %570 = vmatpush.msra.mxu0 0.0
        %571 = vmatpush.msra.mxu0 0.0
        %572 = vmatpush.msra.mxu0 0.0
        %573 = vmatpush.msra.mxu0 0.0
        %574 = vmatpush.msra.mxu0 0.0
        %575 = vmatpush.msra.mxu0 0.0
        %576 = vmatpush.msra.mxu0 0.0
        %577 = vmatpush.msra.mxu0 0.0
        %578 = vmatpush.msra.mxu0 0.0
        %v579 = vand.u32 %v335, 4294901760
        %v580 = vsub.f32 %v335, %v579
        %v581 = vand.u32 %v580, 4294901760
        %v582 = vsub.f32 %v580, %v581
        %v583 = vand.u32 %v582, 4294901760
        %584 = vmatpush.msra.mxu0 %v583
        %v585 = vand.u32 %v371, 4294901760
        %586 = vmatmul.f32.gmra.mxu0 %v585
        %v587 = vpop.f32.mrf.mxu0
        %v588 = vadd.f32 %v442, %v587
        %v589 = vand.u32 %v374, 4294901760
        %590 = vmatmul.f32.gmra.mxu0 %v589
        %v591 = vpop.f32.mrf.mxu0
        %v592 = vadd.f32 %v450, %v591
        %v593 = vand.u32 %v377, 4294901760
        %594 = vmatmul.f32.gmra.mxu0 %v593
        %v595 = vpop.f32.mrf.mxu0
        %v596 = vadd.f32 %v458, %v595
        %v597 = vand.u32 %v380, 4294901760
        %598 = vmatmul.f32.gmra.mxu0 %v597
        %v599 = vpop.f32.mrf.mxu0
        %v600 = vadd.f32 %v466, %v599
        %v601 = vand.u32 %v383, 4294901760
        %602 = vmatmul.f32.gmra.mxu0 %v601
        %v603 = vpop.f32.mrf.mxu0
        %v604 = vadd.f32 %v474, %v603
        %v605 = vand.u32 %v386, 4294901760
        %606 = vmatmul.f32.gmra.mxu0 %v605
        %v607 = vpop.f32.mrf.mxu0
        %v608 = vadd.f32 %v482, %v607
        %v609 = vand.u32 %v389, 4294901760
        %610 = vmatmul.f32.gmra.mxu0 %v609
        %v611 = vpop.f32.mrf.mxu0
        %v612 = vadd.f32 %v490, %v611
        %v613 = vand.u32 %v392, 4294901760
        %614 = vmatmul.f32.gmra.mxu0 %v613
        %v615 = vpop.f32.mrf.mxu0
        %v616 = vadd.f32 %v498, %v615
        %v617 = vand.u32 %v395, 4294901760
        %618 = vmatmul.f32.gmra.mxu0 %v617
        %v619 = vpop.f32.mrf.mxu0
        %v620 = vadd.f32 %v506, %v619
        %v621 = vand.u32 %v398, 4294901760
        %622 = vmatmul.f32.gmra.mxu0 %v621
        %v623 = vpop.f32.mrf.mxu0
        %v624 = vadd.f32 %v514, %v623
        %v625 = vand.u32 %v401, 4294901760
        %626 = vmatmul.f32.gmra.mxu0 %v625
        %v627 = vpop.f32.mrf.mxu0
        %v628 = vadd.f32 %v522, %v627
        %v629 = vand.u32 %v404, 4294901760
        %630 = vmatmul.f32.gmra.mxu0 %v629
        %v631 = vpop.f32.mrf.mxu0
        %v632 = vadd.f32 %v530, %v631
        %v633 = vand.u32 %v407, 4294901760
        %634 = vmatmul.f32.gmra.mxu0 %v633
        %v635 = vpop.f32.mrf.mxu0
        %v636 = vadd.f32 %v538, %v635
        %v637 = vand.u32 %v410, 4294901760
        %638 = vmatmul.f32.gmra.mxu0 %v637
        %v639 = vpop.f32.mrf.mxu0
        %v640 = vadd.f32 %v546, %v639
        %v641 = vand.u32 %v413, 4294901760
        %642 = vmatmul.f32.gmra.mxu0 %v641
        %v643 = vpop.f32.mrf.mxu0
        %v644 = vadd.f32 %v554, %v643
        %v645 = vand.u32 %v416, 4294901760
        %646 = vmatmul.f32.gmra.mxu0 %v645
        %v647 = vpop.f32.mrf.mxu0
        %v648 = vadd.f32 %v562, %v647
        %649 = vdwg.mxu0
        %650 = vmatpush.msra.mxu0 0.0
        %651 = vmatpush.msra.mxu0 0.0
        %652 = vmatpush.msra.mxu0 0.0
        %653 = vmatpush.msra.mxu0 0.0
        %654 = vmatpush.msra.mxu0 0.0
        %655 = vmatpush.msra.mxu0 0.0
        %656 = vmatpush.msra.mxu0 0.0
        %657 = vmatpush.msra.mxu0 0.0
        %658 = vmatpush.msra.mxu0 0.0
        %659 = vmatpush.msra.mxu0 0.0
        %660 = vmatpush.msra.mxu0 0.0
        %661 = vmatpush.msra.mxu0 0.0
        %662 = vmatpush.msra.mxu0 0.0
        %663 = vmatpush.msra.mxu0 0.0
        %664 = vmatpush.msra.mxu0 0.0
        %v665 = vand.u32 %v335, 4294901760
        %v666 = vsub.f32 %v335, %v665
        %667 = vmatpush.msra.mxu0 %v666
        %v668 = vand.u32 %v371, 4294901760
        %v669 = vsub.f32 %v371, %v668
        %670 = vmatmul.f32.gmra.mxu0 %v669
        %v671 = vpop.f32.mrf.mxu0
        %v672 = vadd.f32 %v588, %v671
        %v673 = vand.u32 %v374, 4294901760
        %v674 = vsub.f32 %v374, %v673
        %675 = vmatmul.f32.gmra.mxu0 %v674
        %v676 = vpop.f32.mrf.mxu0
        %v677 = vadd.f32 %v592, %v676
        %v678 = vand.u32 %v377, 4294901760
        %v679 = vsub.f32 %v377, %v678
        %680 = vmatmul.f32.gmra.mxu0 %v679
        %v681 = vpop.f32.mrf.mxu0
        %v682 = vadd.f32 %v596, %v681
        %v683 = vand.u32 %v380, 4294901760
        %v684 = vsub.f32 %v380, %v683
        %685 = vmatmul.f32.gmra.mxu0 %v684
        %v686 = vpop.f32.mrf.mxu0
        %v687 = vadd.f32 %v600, %v686
        %v688 = vand.u32 %v383, 4294901760
        %v689 = vsub.f32 %v383, %v688
        %690 = vmatmul.f32.gmra.mxu0 %v689
        %v691 = vpop.f32.mrf.mxu0
        %v692 = vadd.f32 %v604, %v691
        %v693 = vand.u32 %v386, 4294901760
        %v694 = vsub.f32 %v386, %v693
        %695 = vmatmul.f32.gmra.mxu0 %v694
        %v696 = vpop.f32.mrf.mxu0
        %v697 = vadd.f32 %v608, %v696
        %v698 = vand.u32 %v389, 4294901760
        %v699 = vsub.f32 %v389, %v698
        %700 = vmatmul.f32.gmra.mxu0 %v699
        %v701 = vpop.f32.mrf.mxu0
        %v702 = vadd.f32 %v612, %v701
        %v703 = vand.u32 %v392, 4294901760
        %v704 = vsub.f32 %v392, %v703
        %705 = vmatmul.f32.gmra.mxu0 %v704
        %v706 = vpop.f32.mrf.mxu0
        %v707 = vadd.f32 %v616, %v706
        %v708 = vand.u32 %v395, 4294901760
        %v709 = vsub.f32 %v395, %v708
        %710 = vmatmul.f32.gmra.mxu0 %v709
        %v711 = vpop.f32.mrf.mxu0
        %v712 = vadd.f32 %v620, %v711
        %v713 = vand.u32 %v398, 4294901760
        %v714 = vsub.f32 %v398, %v713
        %715 = vmatmul.f32.gmra.mxu0 %v714
        %v716 = vpop.f32.mrf.mxu0
        %v717 = vadd.f32 %v624, %v716
        %v718 = vand.u32 %v401, 4294901760
        %v719 = vsub.f32 %v401, %v718
        %720 = vmatmul.f32.gmra.mxu0 %v719
        %v721 = vpop.f32.mrf.mxu0
        %v722 = vadd.f32 %v628, %v721
        %v723 = vand.u32 %v404, 4294901760
        %v724 = vsub.f32 %v404, %v723
        %725 = vmatmul.f32.gmra.mxu0 %v724
        %v726 = vpop.f32.mrf.mxu0
        %v727 = vadd.f32 %v632, %v726
        %v728 = vand.u32 %v407, 4294901760
        %v729 = vsub.f32 %v407, %v728
        %730 = vmatmul.f32.gmra.mxu0 %v729
        %v731 = vpop.f32.mrf.mxu0
        %v732 = vadd.f32 %v636, %v731
        %v733 = vand.u32 %v410, 4294901760
        %v734 = vsub.f32 %v410, %v733
        %735 = vmatmul.f32.gmra.mxu0 %v734
        %v736 = vpop.f32.mrf.mxu0
        %v737 = vadd.f32 %v640, %v736
        %v738 = vand.u32 %v413, 4294901760
        %v739 = vsub.f32 %v413, %v738
        %740 = vmatmul.f32.gmra.mxu0 %v739
        %v741 = vpop.f32.mrf.mxu0
        %v742 = vadd.f32 %v644, %v741
        %v743 = vand.u32 %v416, 4294901760
        %v744 = vsub.f32 %v416, %v743
        %745 = vmatmul.f32.gmra.mxu0 %v744
        %v746 = vpop.f32.mrf.mxu0
        %v747 = vadd.f32 %v648, %v746
        %748 = vdwg.mxu0
        %749 = vmatpush.msra.mxu0 0.0
        %750 = vmatpush.msra.mxu0 0.0
        %751 = vmatpush.msra.mxu0 0.0
        %752 = vmatpush.msra.mxu0 0.0
        %753 = vmatpush.msra.mxu0 0.0
        %754 = vmatpush.msra.mxu0 0.0
        %755 = vmatpush.msra.mxu0 0.0
        %756 = vmatpush.msra.mxu0 0.0
        %757 = vmatpush.msra.mxu0 0.0
        %758 = vmatpush.msra.mxu0 0.0
        %759 = vmatpush.msra.mxu0 0.0
        %760 = vmatpush.msra.mxu0 0.0
        %761 = vmatpush.msra.mxu0 0.0
        %762 = vmatpush.msra.mxu0 0.0
        %763 = vmatpush.msra.mxu0 0.0
        %v764 = vand.u32 %v335, 4294901760
        %765 = vmatpush.msra.mxu0 %v764
        %v766 = vand.u32 %v371, 4294901760
        %v767 = vsub.f32 %v371, %v766
        %v768 = vand.u32 %v767, 4294901760
        %769 = vmatmul.f32.gmra.mxu0 %v768
        %v770 = vpop.f32.mrf.mxu0
        %v771 = vadd.f32 %v672, %v770
        %v772 = vand.u32 %v374, 4294901760
        %v773 = vsub.f32 %v374, %v772
        %v774 = vand.u32 %v773, 4294901760
        %775 = vmatmul.f32.gmra.mxu0 %v774
        %v776 = vpop.f32.mrf.mxu0
        %v777 = vadd.f32 %v677, %v776
        %v778 = vand.u32 %v377, 4294901760
        %v779 = vsub.f32 %v377, %v778
        %v780 = vand.u32 %v779, 4294901760
        %781 = vmatmul.f32.gmra.mxu0 %v780
        %v782 = vpop.f32.mrf.mxu0
        %v783 = vadd.f32 %v682, %v782
        %v784 = vand.u32 %v380, 4294901760
        %v785 = vsub.f32 %v380, %v784
        %v786 = vand.u32 %v785, 4294901760
        %787 = vmatmul.f32.gmra.mxu0 %v786
        %v788 = vpop.f32.mrf.mxu0
        %v789 = vadd.f32 %v687, %v788
        %v790 = vand.u32 %v383, 4294901760
        %v791 = vsub.f32 %v383, %v790
        %v792 = vand.u32 %v791, 4294901760
        %793 = vmatmul.f32.gmra.mxu0 %v792
        %v794 = vpop.f32.mrf.mxu0
        %v795 = vadd.f32 %v692, %v794
        %v796 = vand.u32 %v386, 4294901760
        %v797 = vsub.f32 %v386, %v796
        %v798 = vand.u32 %v797, 4294901760
        %799 = vmatmul.f32.gmra.mxu0 %v798
        %v800 = vpop.f32.mrf.mxu0
        %v801 = vadd.f32 %v697, %v800
        %v802 = vand.u32 %v389, 4294901760
        %v803 = vsub.f32 %v389, %v802
        %v804 = vand.u32 %v803, 4294901760
        %805 = vmatmul.f32.gmra.mxu0 %v804
        %v806 = vpop.f32.mrf.mxu0
        %v807 = vadd.f32 %v702, %v806
        %v808 = vand.u32 %v392, 4294901760
        %v809 = vsub.f32 %v392, %v808
        %v810 = vand.u32 %v809, 4294901760
        %811 = vmatmul.f32.gmra.mxu0 %v810
        %v812 = vpop.f32.mrf.mxu0
        %v813 = vadd.f32 %v707, %v812
        %v814 = vand.u32 %v395, 4294901760
        %v815 = vsub.f32 %v395, %v814
        %v816 = vand.u32 %v815, 4294901760
        %817 = vmatmul.f32.gmra.mxu0 %v816
        %v818 = vpop.f32.mrf.mxu0
        %v819 = vadd.f32 %v712, %v818
        %v820 = vand.u32 %v398, 4294901760
        %v821 = vsub.f32 %v398, %v820
        %v822 = vand.u32 %v821, 4294901760
        %823 = vmatmul.f32.gmra.mxu0 %v822
        %v824 = vpop.f32.mrf.mxu0
        %v825 = vadd.f32 %v717, %v824
        %v826 = vand.u32 %v401, 4294901760
        %v827 = vsub.f32 %v401, %v826
        %v828 = vand.u32 %v827, 4294901760
        %829 = vmatmul.f32.gmra.mxu0 %v828
        %v830 = vpop.f32.mrf.mxu0
        %v831 = vadd.f32 %v722, %v830
        %v832 = vand.u32 %v404, 4294901760
        %v833 = vsub.f32 %v404, %v832
        %v834 = vand.u32 %v833, 4294901760
        %835 = vmatmul.f32.gmra.mxu0 %v834
        %v836 = vpop.f32.mrf.mxu0
        %v837 = vadd.f32 %v727, %v836
        %v838 = vand.u32 %v407, 4294901760
        %v839 = vsub.f32 %v407, %v838
        %v840 = vand.u32 %v839, 4294901760
        %841 = vmatmul.f32.gmra.mxu0 %v840
        %v842 = vpop.f32.mrf.mxu0
        %v843 = vadd.f32 %v732, %v842
        %v844 = vand.u32 %v410, 4294901760
        %v845 = vsub.f32 %v410, %v844
        %v846 = vand.u32 %v845, 4294901760
        %847 = vmatmul.f32.gmra.mxu0 %v846
        %v848 = vpop.f32.mrf.mxu0
        %v849 = vadd.f32 %v737, %v848
        %v850 = vand.u32 %v413, 4294901760
        %v851 = vsub.f32 %v413, %v850
        %v852 = vand.u32 %v851, 4294901760
        %853 = vmatmul.f32.gmra.mxu0 %v852
        %v854 = vpop.f32.mrf.mxu0
        %v855 = vadd.f32 %v742, %v854
        %v856 = vand.u32 %v416, 4294901760
        %v857 = vsub.f32 %v416, %v856
        %v858 = vand.u32 %v857, 4294901760
        %859 = vmatmul.f32.gmra.mxu0 %v858
        %v860 = vpop.f32.mrf.mxu0
        %v861 = vadd.f32 %v747, %v860
        %862 = vdwg.mxu0
        %863 = vmatpush.msra.mxu0 0.0
        %864 = vmatpush.msra.mxu0 0.0
        %865 = vmatpush.msra.mxu0 0.0
        %866 = vmatpush.msra.mxu0 0.0
        %867 = vmatpush.msra.mxu0 0.0
        %868 = vmatpush.msra.mxu0 0.0
        %869 = vmatpush.msra.mxu0 0.0
        %870 = vmatpush.msra.mxu0 0.0
        %871 = vmatpush.msra.mxu0 0.0
        %872 = vmatpush.msra.mxu0 0.0
        %873 = vmatpush.msra.mxu0 0.0
        %874 = vmatpush.msra.mxu0 0.0
        %875 = vmatpush.msra.mxu0 0.0
        %876 = vmatpush.msra.mxu0 0.0
        %877 = vmatpush.msra.mxu0 0.0
        %v878 = vand.u32 %v335, 4294901760
        %v879 = vsub.f32 %v335, %v878
        %v880 = vand.u32 %v879, 4294901760
        %881 = vmatpush.msra.mxu0 %v880
        %v882 = vand.u32 %v371, 4294901760
        %883 = vmatmul.f32.gmra.mxu0 %v882
        %v884 = vpop.f32.mrf.mxu0
        %v885 = vadd.f32 %v771, %v884
        %v886 = vand.u32 %v374, 4294901760
        %887 = vmatmul.f32.gmra.mxu0 %v886
        %v888 = vpop.f32.mrf.mxu0
        %v889 = vadd.f32 %v777, %v888
        %v890 = vand.u32 %v377, 4294901760
        %891 = vmatmul.f32.gmra.mxu0 %v890
        %v892 = vpop.f32.mrf.mxu0
        %v893 = vadd.f32 %v783, %v892
        %v894 = vand.u32 %v380, 4294901760
        %895 = vmatmul.f32.gmra.mxu0 %v894
        %v896 = vpop.f32.mrf.mxu0
        %v897 = vadd.f32 %v789, %v896
        %v898 = vand.u32 %v383, 4294901760
        %899 = vmatmul.f32.gmra.mxu0 %v898
        %v900 = vpop.f32.mrf.mxu0
        %v901 = vadd.f32 %v795, %v900
        %v902 = vand.u32 %v386, 4294901760
        %903 = vmatmul.f32.gmra.mxu0 %v902
        %v904 = vpop.f32.mrf.mxu0
        %v905 = vadd.f32 %v801, %v904
        %v906 = vand.u32 %v389, 4294901760
        %907 = vmatmul.f32.gmra.mxu0 %v906
        %v908 = vpop.f32.mrf.mxu0
        %v909 = vadd.f32 %v807, %v908
        %v910 = vand.u32 %v392, 4294901760
        %911 = vmatmul.f32.gmra.mxu0 %v910
        %v912 = vpop.f32.mrf.mxu0
        %v913 = vadd.f32 %v813, %v912
        %v914 = vand.u32 %v395, 4294901760
        %915 = vmatmul.f32.gmra.mxu0 %v914
        %v916 = vpop.f32.mrf.mxu0
        %v917 = vadd.f32 %v819, %v916
        %v918 = vand.u32 %v398, 4294901760
        %919 = vmatmul.f32.gmra.mxu0 %v918
        %v920 = vpop.f32.mrf.mxu0
        %v921 = vadd.f32 %v825, %v920
        %v922 = vand.u32 %v401, 4294901760
        %923 = vmatmul.f32.gmra.mxu0 %v922
        %v924 = vpop.f32.mrf.mxu0
        %v925 = vadd.f32 %v831, %v924
        %v926 = vand.u32 %v404, 4294901760
        %927 = vmatmul.f32.gmra.mxu0 %v926
        %v928 = vpop.f32.mrf.mxu0
        %v929 = vadd.f32 %v837, %v928
        %v930 = vand.u32 %v407, 4294901760
        %931 = vmatmul.f32.gmra.mxu0 %v930
        %v932 = vpop.f32.mrf.mxu0
        %v933 = vadd.f32 %v843, %v932
        %v934 = vand.u32 %v410, 4294901760
        %935 = vmatmul.f32.gmra.mxu0 %v934
        %v936 = vpop.f32.mrf.mxu0
        %v937 = vadd.f32 %v849, %v936
        %v938 = vand.u32 %v413, 4294901760
        %939 = vmatmul.f32.gmra.mxu0 %v938
        %v940 = vpop.f32.mrf.mxu0
        %v941 = vadd.f32 %v855, %v940
        %v942 = vand.u32 %v416, 4294901760
        %943 = vmatmul.f32.gmra.mxu0 %v942
        %v944 = vpop.f32.mrf.mxu0
        %v945 = vadd.f32 %v861, %v944
        %946 = vdwg.mxu0
        %947 = vmatpush.msra.mxu0 0.0
        %948 = vmatpush.msra.mxu0 0.0
        %949 = vmatpush.msra.mxu0 0.0
        %950 = vmatpush.msra.mxu0 0.0
        %951 = vmatpush.msra.mxu0 0.0
        %952 = vmatpush.msra.mxu0 0.0
        %953 = vmatpush.msra.mxu0 0.0
        %954 = vmatpush.msra.mxu0 0.0
        %955 = vmatpush.msra.mxu0 0.0
        %956 = vmatpush.msra.mxu0 0.0
        %957 = vmatpush.msra.mxu0 0.0
        %958 = vmatpush.msra.mxu0 0.0
        %959 = vmatpush.msra.mxu0 0.0
        %960 = vmatpush.msra.mxu0 0.0
        %961 = vmatpush.msra.mxu0 0.0
        %v962 = vand.u32 %v335, 4294901760
        %963 = vmatpush.msra.mxu0 %v962
        %v964 = vand.u32 %v371, 4294901760
        %965 = vmatmul.f32.gmra.mxu0 %v964
        %v966 = vpop.f32.mrf.mxu0
        %v967 = vadd.f32 %v885, %v966
        %v968 = vand.u32 %v374, 4294901760
        %969 = vmatmul.f32.gmra.mxu0 %v968
        %v970 = vpop.f32.mrf.mxu0
        %v971 = vadd.f32 %v889, %v970
        %v972 = vand.u32 %v377, 4294901760
        %973 = vmatmul.f32.gmra.mxu0 %v972
        %v974 = vpop.f32.mrf.mxu0
        %v975 = vadd.f32 %v893, %v974
        %v976 = vand.u32 %v380, 4294901760
        %977 = vmatmul.f32.gmra.mxu0 %v976
        %v978 = vpop.f32.mrf.mxu0
        %v979 = vadd.f32 %v897, %v978
        %v980 = vand.u32 %v383, 4294901760
        %981 = vmatmul.f32.gmra.mxu0 %v980
        %v982 = vpop.f32.mrf.mxu0
        %v983 = vadd.f32 %v901, %v982
        %v984 = vand.u32 %v386, 4294901760
        %985 = vmatmul.f32.gmra.mxu0 %v984
        %v986 = vpop.f32.mrf.mxu0
        %v987 = vadd.f32 %v905, %v986
        %v988 = vand.u32 %v389, 4294901760
        %989 = vmatmul.f32.gmra.mxu0 %v988
        %v990 = vpop.f32.mrf.mxu0
        %v991 = vadd.f32 %v909, %v990
        %v992 = vand.u32 %v392, 4294901760
        %993 = vmatmul.f32.gmra.mxu0 %v992
        %v994 = vpop.f32.mrf.mxu0
        %v995 = vadd.f32 %v913, %v994
        %v996 = vand.u32 %v395, 4294901760
        %997 = vmatmul.f32.gmra.mxu0 %v996
        %v998 = vpop.f32.mrf.mxu0
        %v999 = vadd.f32 %v917, %v998
        %v1000 = vand.u32 %v398, 4294901760
        %1001 = vmatmul.f32.gmra.mxu0 %v1000
        %v1002 = vpop.f32.mrf.mxu0
        %v1003 = vadd.f32 %v921, %v1002
        %v1004 = vand.u32 %v401, 4294901760
        %1005 = vmatmul.f32.gmra.mxu0 %v1004
        %v1006 = vpop.f32.mrf.mxu0
        %v1007 = vadd.f32 %v925, %v1006
        %v1008 = vand.u32 %v404, 4294901760
        %1009 = vmatmul.f32.gmra.mxu0 %v1008
        %v1010 = vpop.f32.mrf.mxu0
        %v1011 = vadd.f32 %v929, %v1010
        %v1012 = vand.u32 %v407, 4294901760
        %1013 = vmatmul.f32.gmra.mxu0 %v1012
        %v1014 = vpop.f32.mrf.mxu0
        %v1015 = vadd.f32 %v933, %v1014
        %v1016 = vand.u32 %v410, 4294901760
        %1017 = vmatmul.f32.gmra.mxu0 %v1016
        %v1018 = vpop.f32.mrf.mxu0
        %v1019 = vadd.f32 %v937, %v1018
        %v1020 = vand.u32 %v413, 4294901760
        %1021 = vmatmul.f32.gmra.mxu0 %v1020
        %v1022 = vpop.f32.mrf.mxu0
        %v1023 = vadd.f32 %v941, %v1022
        %v1024 = vand.u32 %v416, 4294901760
        %1025 = vmatmul.f32.gmra.mxu0 %v1024
        %v1026 = vpop.f32.mrf.mxu0
        %v1027 = vadd.f32 %v945, %v1026
        %1028 = vdwg.mxu0
        %1029 = vmatpush.msra.mxu0 0.0
        %1030 = vmatpush.msra.mxu0 0.0
        %1031 = vmatpush.msra.mxu0 0.0
        %1032 = vmatpush.msra.mxu0 0.0
        %1033 = vmatpush.msra.mxu0 0.0
        %1034 = vmatpush.msra.mxu0 0.0
        %1035 = vmatpush.msra.mxu0 0.0
        %1036 = vmatpush.msra.mxu0 0.0
        %1037 = vmatpush.msra.mxu0 0.0
        %1038 = vmatpush.msra.mxu0 0.0
        %1039 = vmatpush.msra.mxu0 0.0
        %1040 = vmatpush.msra.mxu0 0.0
        %1041 = vmatpush.msra.mxu0 0.0
        %1042 = vmatpush.msra.mxu0 0.0
        %1043 = vmatpush.msra.mxu0 0.0
        %v1044 = vand.u32 %v336, 4294901760
        %1045 = vmatpush.msra.mxu0 %v1044
        %v1046 = vand.u32 %v371, 4294901760
        %v1047 = vsub.f32 %v371, %v1046
        %v1048 = vand.u32 %v1047, 4294901760
        %v1049 = vsub.f32 %v1047, %v1048
        %v1050 = vand.u32 %v1049, 4294901760
        %1051 = vmatmul.f32.gmra.mxu0 %v1050
        %v1052 = vpop.f32.mrf.mxu0
        %v1053 = vadd.f32 0.0, %v1052
        %v1054 = vand.u32 %v374, 4294901760
        %v1055 = vsub.f32 %v374, %v1054
        %v1056 = vand.u32 %v1055, 4294901760
        %v1057 = vsub.f32 %v1055, %v1056
        %v1058 = vand.u32 %v1057, 4294901760
        %1059 = vmatmul.f32.gmra.mxu0 %v1058
        %v1060 = vpop.f32.mrf.mxu0
        %v1061 = vadd.f32 0.0, %v1060
        %v1062 = vand.u32 %v377, 4294901760
        %v1063 = vsub.f32 %v377, %v1062
        %v1064 = vand.u32 %v1063, 4294901760
        %v1065 = vsub.f32 %v1063, %v1064
        %v1066 = vand.u32 %v1065, 4294901760
        %1067 = vmatmul.f32.gmra.mxu0 %v1066
        %v1068 = vpop.f32.mrf.mxu0
        %v1069 = vadd.f32 0.0, %v1068
        %v1070 = vand.u32 %v380, 4294901760
        %v1071 = vsub.f32 %v380, %v1070
        %v1072 = vand.u32 %v1071, 4294901760
        %v1073 = vsub.f32 %v1071, %v1072
        %v1074 = vand.u32 %v1073, 4294901760
        %1075 = vmatmul.f32.gmra.mxu0 %v1074
        %v1076 = vpop.f32.mrf.mxu0
        %v1077 = vadd.f32 0.0, %v1076
        %v1078 = vand.u32 %v383, 4294901760
        %v1079 = vsub.f32 %v383, %v1078
        %v1080 = vand.u32 %v1079, 4294901760
        %v1081 = vsub.f32 %v1079, %v1080
        %v1082 = vand.u32 %v1081, 4294901760
        %1083 = vmatmul.f32.gmra.mxu0 %v1082
        %v1084 = vpop.f32.mrf.mxu0
        %v1085 = vadd.f32 0.0, %v1084
        %v1086 = vand.u32 %v386, 4294901760
        %v1087 = vsub.f32 %v386, %v1086
        %v1088 = vand.u32 %v1087, 4294901760
        %v1089 = vsub.f32 %v1087, %v1088
        %v1090 = vand.u32 %v1089, 4294901760
        %1091 = vmatmul.f32.gmra.mxu0 %v1090
        %v1092 = vpop.f32.mrf.mxu0
        %v1093 = vadd.f32 0.0, %v1092
        %v1094 = vand.u32 %v389, 4294901760
        %v1095 = vsub.f32 %v389, %v1094
        %v1096 = vand.u32 %v1095, 4294901760
        %v1097 = vsub.f32 %v1095, %v1096
        %v1098 = vand.u32 %v1097, 4294901760
        %1099 = vmatmul.f32.gmra.mxu0 %v1098
        %v1100 = vpop.f32.mrf.mxu0
        %v1101 = vadd.f32 0.0, %v1100
        %v1102 = vand.u32 %v392, 4294901760
        %v1103 = vsub.f32 %v392, %v1102
        %v1104 = vand.u32 %v1103, 4294901760
        %v1105 = vsub.f32 %v1103, %v1104
        %v1106 = vand.u32 %v1105, 4294901760
        %1107 = vmatmul.f32.gmra.mxu0 %v1106
        %v1108 = vpop.f32.mrf.mxu0
        %v1109 = vadd.f32 0.0, %v1108
        %v1110 = vand.u32 %v395, 4294901760
        %v1111 = vsub.f32 %v395, %v1110
        %v1112 = vand.u32 %v1111, 4294901760
        %v1113 = vsub.f32 %v1111, %v1112
        %v1114 = vand.u32 %v1113, 4294901760
        %1115 = vmatmul.f32.gmra.mxu0 %v1114
        %v1116 = vpop.f32.mrf.mxu0
        %v1117 = vadd.f32 0.0, %v1116
        %v1118 = vand.u32 %v398, 4294901760
        %v1119 = vsub.f32 %v398, %v1118
        %v1120 = vand.u32 %v1119, 4294901760
        %v1121 = vsub.f32 %v1119, %v1120
        %v1122 = vand.u32 %v1121, 4294901760
        %1123 = vmatmul.f32.gmra.mxu0 %v1122
        %v1124 = vpop.f32.mrf.mxu0
        %v1125 = vadd.f32 0.0, %v1124
        %v1126 = vand.u32 %v401, 4294901760
        %v1127 = vsub.f32 %v401, %v1126
        %v1128 = vand.u32 %v1127, 4294901760
        %v1129 = vsub.f32 %v1127, %v1128
        %v1130 = vand.u32 %v1129, 4294901760
        %1131 = vmatmul.f32.gmra.mxu0 %v1130
        %v1132 = vpop.f32.mrf.mxu0
        %v1133 = vadd.f32 0.0, %v1132
        %v1134 = vand.u32 %v404, 4294901760
        %v1135 = vsub.f32 %v404, %v1134
        %v1136 = vand.u32 %v1135, 4294901760
        %v1137 = vsub.f32 %v1135, %v1136
        %v1138 = vand.u32 %v1137, 4294901760
        %1139 = vmatmul.f32.gmra.mxu0 %v1138
        %v1140 = vpop.f32.mrf.mxu0
        %v1141 = vadd.f32 0.0, %v1140
        %v1142 = vand.u32 %v407, 4294901760
        %v1143 = vsub.f32 %v407, %v1142
        %v1144 = vand.u32 %v1143, 4294901760
        %v1145 = vsub.f32 %v1143, %v1144
        %v1146 = vand.u32 %v1145, 4294901760
        %1147 = vmatmul.f32.gmra.mxu0 %v1146
        %v1148 = vpop.f32.mrf.mxu0
        %v1149 = vadd.f32 0.0, %v1148
        %v1150 = vand.u32 %v410, 4294901760
        %v1151 = vsub.f32 %v410, %v1150
        %v1152 = vand.u32 %v1151, 4294901760
        %v1153 = vsub.f32 %v1151, %v1152
        %v1154 = vand.u32 %v1153, 4294901760
        %1155 = vmatmul.f32.gmra.mxu0 %v1154
        %v1156 = vpop.f32.mrf.mxu0
        %v1157 = vadd.f32 0.0, %v1156
        %v1158 = vand.u32 %v413, 4294901760
        %v1159 = vsub.f32 %v413, %v1158
        %v1160 = vand.u32 %v1159, 4294901760
        %v1161 = vsub.f32 %v1159, %v1160
        %v1162 = vand.u32 %v1161, 4294901760
        %1163 = vmatmul.f32.gmra.mxu0 %v1162
        %v1164 = vpop.f32.mrf.mxu0
        %v1165 = vadd.f32 0.0, %v1164
        %v1166 = vand.u32 %v416, 4294901760
        %v1167 = vsub.f32 %v416, %v1166
        %v1168 = vand.u32 %v1167, 4294901760
        %v1169 = vsub.f32 %v1167, %v1168
        %v1170 = vand.u32 %v1169, 4294901760
        %1171 = vmatmul.f32.gmra.mxu0 %v1170
        %v1172 = vpop.f32.mrf.mxu0
        %v1173 = vadd.f32 0.0, %v1172
        %1174 = vdwg.mxu0
        %1175 = vmatpush.msra.mxu0 0.0
        %1176 = vmatpush.msra.mxu0 0.0
        %1177 = vmatpush.msra.mxu0 0.0
        %1178 = vmatpush.msra.mxu0 0.0
        %1179 = vmatpush.msra.mxu0 0.0
        %1180 = vmatpush.msra.mxu0 0.0
        %1181 = vmatpush.msra.mxu0 0.0
        %1182 = vmatpush.msra.mxu0 0.0
        %1183 = vmatpush.msra.mxu0 0.0
        %1184 = vmatpush.msra.mxu0 0.0
        %1185 = vmatpush.msra.mxu0 0.0
        %1186 = vmatpush.msra.mxu0 0.0
        %1187 = vmatpush.msra.mxu0 0.0
        %1188 = vmatpush.msra.mxu0 0.0
        %1189 = vmatpush.msra.mxu0 0.0
        %v1190 = vand.u32 %v336, 4294901760
        %v1191 = vsub.f32 %v336, %v1190
        %v1192 = vand.u32 %v1191, 4294901760
        %v1193 = vsub.f32 %v1191, %v1192
        %v1194 = vand.u32 %v1193, 4294901760
        %1195 = vmatpush.msra.mxu0 %v1194
        %v1196 = vand.u32 %v371, 4294901760
        %1197 = vmatmul.f32.gmra.mxu0 %v1196
        %v1198 = vpop.f32.mrf.mxu0
        %v1199 = vadd.f32 %v1053, %v1198
        %v1200 = vand.u32 %v374, 4294901760
        %1201 = vmatmul.f32.gmra.mxu0 %v1200
        %v1202 = vpop.f32.mrf.mxu0
        %v1203 = vadd.f32 %v1061, %v1202
        %v1204 = vand.u32 %v377, 4294901760
        %1205 = vmatmul.f32.gmra.mxu0 %v1204
        %v1206 = vpop.f32.mrf.mxu0
        %v1207 = vadd.f32 %v1069, %v1206
        %v1208 = vand.u32 %v380, 4294901760
        %1209 = vmatmul.f32.gmra.mxu0 %v1208
        %v1210 = vpop.f32.mrf.mxu0
        %v1211 = vadd.f32 %v1077, %v1210
        %v1212 = vand.u32 %v383, 4294901760
        %1213 = vmatmul.f32.gmra.mxu0 %v1212
        %v1214 = vpop.f32.mrf.mxu0
        %v1215 = vadd.f32 %v1085, %v1214
        %v1216 = vand.u32 %v386, 4294901760
        %1217 = vmatmul.f32.gmra.mxu0 %v1216
        %v1218 = vpop.f32.mrf.mxu0
        %v1219 = vadd.f32 %v1093, %v1218
        %v1220 = vand.u32 %v389, 4294901760
        %1221 = vmatmul.f32.gmra.mxu0 %v1220
        %v1222 = vpop.f32.mrf.mxu0
        %v1223 = vadd.f32 %v1101, %v1222
        %v1224 = vand.u32 %v392, 4294901760
        %1225 = vmatmul.f32.gmra.mxu0 %v1224
        %v1226 = vpop.f32.mrf.mxu0
        %v1227 = vadd.f32 %v1109, %v1226
        %v1228 = vand.u32 %v395, 4294901760
        %1229 = vmatmul.f32.gmra.mxu0 %v1228
        %v1230 = vpop.f32.mrf.mxu0
        %v1231 = vadd.f32 %v1117, %v1230
        %v1232 = vand.u32 %v398, 4294901760
        %1233 = vmatmul.f32.gmra.mxu0 %v1232
        %v1234 = vpop.f32.mrf.mxu0
        %v1235 = vadd.f32 %v1125, %v1234
        %v1236 = vand.u32 %v401, 4294901760
        %1237 = vmatmul.f32.gmra.mxu0 %v1236
        %v1238 = vpop.f32.mrf.mxu0
        %v1239 = vadd.f32 %v1133, %v1238
        %v1240 = vand.u32 %v404, 4294901760
        %1241 = vmatmul.f32.gmra.mxu0 %v1240
        %v1242 = vpop.f32.mrf.mxu0
        %v1243 = vadd.f32 %v1141, %v1242
        %v1244 = vand.u32 %v407, 4294901760
        %1245 = vmatmul.f32.gmra.mxu0 %v1244
        %v1246 = vpop.f32.mrf.mxu0
        %v1247 = vadd.f32 %v1149, %v1246
        %v1248 = vand.u32 %v410, 4294901760
        %1249 = vmatmul.f32.gmra.mxu0 %v1248
        %v1250 = vpop.f32.mrf.mxu0
        %v1251 = vadd.f32 %v1157, %v1250
        %v1252 = vand.u32 %v413, 4294901760
        %1253 = vmatmul.f32.gmra.mxu0 %v1252
        %v1254 = vpop.f32.mrf.mxu0
        %v1255 = vadd.f32 %v1165, %v1254
        %v1256 = vand.u32 %v416, 4294901760
        %1257 = vmatmul.f32.gmra.mxu0 %v1256
        %v1258 = vpop.f32.mrf.mxu0
        %v1259 = vadd.f32 %v1173, %v1258
        %1260 = vdwg.mxu0
        %1261 = vmatpush.msra.mxu0 0.0
        %1262 = vmatpush.msra.mxu0 0.0
        %1263 = vmatpush.msra.mxu0 0.0
        %1264 = vmatpush.msra.mxu0 0.0
        %1265 = vmatpush.msra.mxu0 0.0
        %1266 = vmatpush.msra.mxu0 0.0
        %1267 = vmatpush.msra.mxu0 0.0
        %1268 = vmatpush.msra.mxu0 0.0
        %1269 = vmatpush.msra.mxu0 0.0
        %1270 = vmatpush.msra.mxu0 0.0
        %1271 = vmatpush.msra.mxu0 0.0
        %1272 = vmatpush.msra.mxu0 0.0
        %1273 = vmatpush.msra.mxu0 0.0
        %1274 = vmatpush.msra.mxu0 0.0
        %1275 = vmatpush.msra.mxu0 0.0
        %v1276 = vand.u32 %v336, 4294901760
        %v1277 = vsub.f32 %v336, %v1276
        %1278 = vmatpush.msra.mxu0 %v1277
        %v1279 = vand.u32 %v371, 4294901760
        %v1280 = vsub.f32 %v371, %v1279
        %1281 = vmatmul.f32.gmra.mxu0 %v1280
        %v1282 = vpop.f32.mrf.mxu0
        %v1283 = vadd.f32 %v1199, %v1282
        %v1284 = vand.u32 %v374, 4294901760
        %v1285 = vsub.f32 %v374, %v1284
        %1286 = vmatmul.f32.gmra.mxu0 %v1285
        %v1287 = vpop.f32.mrf.mxu0
        %v1288 = vadd.f32 %v1203, %v1287
        %v1289 = vand.u32 %v377, 4294901760
        %v1290 = vsub.f32 %v377, %v1289
        %1291 = vmatmul.f32.gmra.mxu0 %v1290
        %v1292 = vpop.f32.mrf.mxu0
        %v1293 = vadd.f32 %v1207, %v1292
        %v1294 = vand.u32 %v380, 4294901760
        %v1295 = vsub.f32 %v380, %v1294
        %1296 = vmatmul.f32.gmra.mxu0 %v1295
        %v1297 = vpop.f32.mrf.mxu0
        %v1298 = vadd.f32 %v1211, %v1297
        %v1299 = vand.u32 %v383, 4294901760
        %v1300 = vsub.f32 %v383, %v1299
        %1301 = vmatmul.f32.gmra.mxu0 %v1300
        %v1302 = vpop.f32.mrf.mxu0
        %v1303 = vadd.f32 %v1215, %v1302
        %v1304 = vand.u32 %v386, 4294901760
        %v1305 = vsub.f32 %v386, %v1304
        %1306 = vmatmul.f32.gmra.mxu0 %v1305
        %v1307 = vpop.f32.mrf.mxu0
        %v1308 = vadd.f32 %v1219, %v1307
        %v1309 = vand.u32 %v389, 4294901760
        %v1310 = vsub.f32 %v389, %v1309
        %1311 = vmatmul.f32.gmra.mxu0 %v1310
        %v1312 = vpop.f32.mrf.mxu0
        %v1313 = vadd.f32 %v1223, %v1312
        %v1314 = vand.u32 %v392, 4294901760
        %v1315 = vsub.f32 %v392, %v1314
        %1316 = vmatmul.f32.gmra.mxu0 %v1315
        %v1317 = vpop.f32.mrf.mxu0
        %v1318 = vadd.f32 %v1227, %v1317
        %v1319 = vand.u32 %v395, 4294901760
        %v1320 = vsub.f32 %v395, %v1319
        %1321 = vmatmul.f32.gmra.mxu0 %v1320
        %v1322 = vpop.f32.mrf.mxu0
        %v1323 = vadd.f32 %v1231, %v1322
        %v1324 = vand.u32 %v398, 4294901760
        %v1325 = vsub.f32 %v398, %v1324
        %1326 = vmatmul.f32.gmra.mxu0 %v1325
        %v1327 = vpop.f32.mrf.mxu0
        %v1328 = vadd.f32 %v1235, %v1327
        %v1329 = vand.u32 %v401, 4294901760
        %v1330 = vsub.f32 %v401, %v1329
        %1331 = vmatmul.f32.gmra.mxu0 %v1330
        %v1332 = vpop.f32.mrf.mxu0
        %v1333 = vadd.f32 %v1239, %v1332
        %v1334 = vand.u32 %v404, 4294901760
        %v1335 = vsub.f32 %v404, %v1334
        %1336 = vmatmul.f32.gmra.mxu0 %v1335
        %v1337 = vpop.f32.mrf.mxu0
        %v1338 = vadd.f32 %v1243, %v1337
        %v1339 = vand.u32 %v407, 4294901760
        %v1340 = vsub.f32 %v407, %v1339
        %1341 = vmatmul.f32.gmra.mxu0 %v1340
        %v1342 = vpop.f32.mrf.mxu0
        %v1343 = vadd.f32 %v1247, %v1342
        %v1344 = vand.u32 %v410, 4294901760
        %v1345 = vsub.f32 %v410, %v1344
        %1346 = vmatmul.f32.gmra.mxu0 %v1345
        %v1347 = vpop.f32.mrf.mxu0
        %v1348 = vadd.f32 %v1251, %v1347
        %v1349 = vand.u32 %v413, 4294901760
        %v1350 = vsub.f32 %v413, %v1349
        %1351 = vmatmul.f32.gmra.mxu0 %v1350
        %v1352 = vpop.f32.mrf.mxu0
        %v1353 = vadd.f32 %v1255, %v1352
        %v1354 = vand.u32 %v416, 4294901760
        %v1355 = vsub.f32 %v416, %v1354
        %1356 = vmatmul.f32.gmra.mxu0 %v1355
        %v1357 = vpop.f32.mrf.mxu0
        %v1358 = vadd.f32 %v1259, %v1357
        %1359 = vdwg.mxu0
        %1360 = vmatpush.msra.mxu0 0.0
        %1361 = vmatpush.msra.mxu0 0.0
        %1362 = vmatpush.msra.mxu0 0.0
        %1363 = vmatpush.msra.mxu0 0.0
        %1364 = vmatpush.msra.mxu0 0.0
        %1365 = vmatpush.msra.mxu0 0.0
        %1366 = vmatpush.msra.mxu0 0.0
        %1367 = vmatpush.msra.mxu0 0.0
        %1368 = vmatpush.msra.mxu0 0.0
        %1369 = vmatpush.msra.mxu0 0.0
        %1370 = vmatpush.msra.mxu0 0.0
        %1371 = vmatpush.msra.mxu0 0.0
        %1372 = vmatpush.msra.mxu0 0.0
        %1373 = vmatpush.msra.mxu0 0.0
        %1374 = vmatpush.msra.mxu0 0.0
        %v1375 = vand.u32 %v336, 4294901760
        %1376 = vmatpush.msra.mxu0 %v1375
        %v1377 = vand.u32 %v371, 4294901760
        %v1378 = vsub.f32 %v371, %v1377
        %v1379 = vand.u32 %v1378, 4294901760
        %1380 = vmatmul.f32.gmra.mxu0 %v1379
        %v1381 = vpop.f32.mrf.mxu0
        %v1382 = vadd.f32 %v1283, %v1381
        %v1383 = vand.u32 %v374, 4294901760
        %v1384 = vsub.f32 %v374, %v1383
        %v1385 = vand.u32 %v1384, 4294901760
        %1386 = vmatmul.f32.gmra.mxu0 %v1385
        %v1387 = vpop.f32.mrf.mxu0
        %v1388 = vadd.f32 %v1288, %v1387
        %v1389 = vand.u32 %v377, 4294901760
        %v1390 = vsub.f32 %v377, %v1389
        %v1391 = vand.u32 %v1390, 4294901760
        %1392 = vmatmul.f32.gmra.mxu0 %v1391
        %v1393 = vpop.f32.mrf.mxu0
        %v1394 = vadd.f32 %v1293, %v1393
        %v1395 = vand.u32 %v380, 4294901760
        %v1396 = vsub.f32 %v380, %v1395
        %v1397 = vand.u32 %v1396, 4294901760
        %1398 = vmatmul.f32.gmra.mxu0 %v1397
        %v1399 = vpop.f32.mrf.mxu0
        %v1400 = vadd.f32 %v1298, %v1399
        %v1401 = vand.u32 %v383, 4294901760
        %v1402 = vsub.f32 %v383, %v1401
        %v1403 = vand.u32 %v1402, 4294901760
        %1404 = vmatmul.f32.gmra.mxu0 %v1403
        %v1405 = vpop.f32.mrf.mxu0
        %v1406 = vadd.f32 %v1303, %v1405
        %v1407 = vand.u32 %v386, 4294901760
        %v1408 = vsub.f32 %v386, %v1407
        %v1409 = vand.u32 %v1408, 4294901760
        %1410 = vmatmul.f32.gmra.mxu0 %v1409
        %v1411 = vpop.f32.mrf.mxu0
        %v1412 = vadd.f32 %v1308, %v1411
        %v1413 = vand.u32 %v389, 4294901760
        %v1414 = vsub.f32 %v389, %v1413
        %v1415 = vand.u32 %v1414, 4294901760
        %1416 = vmatmul.f32.gmra.mxu0 %v1415
        %v1417 = vpop.f32.mrf.mxu0
        %v1418 = vadd.f32 %v1313, %v1417
        %v1419 = vand.u32 %v392, 4294901760
        %v1420 = vsub.f32 %v392, %v1419
        %v1421 = vand.u32 %v1420, 4294901760
        %1422 = vmatmul.f32.gmra.mxu0 %v1421
        %v1423 = vpop.f32.mrf.mxu0
        %v1424 = vadd.f32 %v1318, %v1423
        %v1425 = vand.u32 %v395, 4294901760
        %v1426 = vsub.f32 %v395, %v1425
        %v1427 = vand.u32 %v1426, 4294901760
        %1428 = vmatmul.f32.gmra.mxu0 %v1427
        %v1429 = vpop.f32.mrf.mxu0
        %v1430 = vadd.f32 %v1323, %v1429
        %v1431 = vand.u32 %v398, 4294901760
        %v1432 = vsub.f32 %v398, %v1431
        %v1433 = vand.u32 %v1432, 4294901760
        %1434 = vmatmul.f32.gmra.mxu0 %v1433
        %v1435 = vpop.f32.mrf.mxu0
        %v1436 = vadd.f32 %v1328, %v1435
        %v1437 = vand.u32 %v401, 4294901760
        %v1438 = vsub.f32 %v401, %v1437
        %v1439 = vand.u32 %v1438, 4294901760
        %1440 = vmatmul.f32.gmra.mxu0 %v1439
        %v1441 = vpop.f32.mrf.mxu0
        %v1442 = vadd.f32 %v1333, %v1441
        %v1443 = vand.u32 %v404, 4294901760
        %v1444 = vsub.f32 %v404, %v1443
        %v1445 = vand.u32 %v1444, 4294901760
        %1446 = vmatmul.f32.gmra.mxu0 %v1445
        %v1447 = vpop.f32.mrf.mxu0
        %v1448 = vadd.f32 %v1338, %v1447
        %v1449 = vand.u32 %v407, 4294901760
        %v1450 = vsub.f32 %v407, %v1449
        %v1451 = vand.u32 %v1450, 4294901760
        %1452 = vmatmul.f32.gmra.mxu0 %v1451
        %v1453 = vpop.f32.mrf.mxu0
        %v1454 = vadd.f32 %v1343, %v1453
        %v1455 = vand.u32 %v410, 4294901760
        %v1456 = vsub.f32 %v410, %v1455
        %v1457 = vand.u32 %v1456, 4294901760
        %1458 = vmatmul.f32.gmra.mxu0 %v1457
        %v1459 = vpop.f32.mrf.mxu0
        %v1460 = vadd.f32 %v1348, %v1459
        %v1461 = vand.u32 %v413, 4294901760
        %v1462 = vsub.f32 %v413, %v1461
        %v1463 = vand.u32 %v1462, 4294901760
        %1464 = vmatmul.f32.gmra.mxu0 %v1463
        %v1465 = vpop.f32.mrf.mxu0
        %v1466 = vadd.f32 %v1353, %v1465
        %v1467 = vand.u32 %v416, 4294901760
        %v1468 = vsub.f32 %v416, %v1467
        %v1469 = vand.u32 %v1468, 4294901760
        %1470 = vmatmul.f32.gmra.mxu0 %v1469
        %v1471 = vpop.f32.mrf.mxu0
        %v1472 = vadd.f32 %v1358, %v1471
        %1473 = vdwg.mxu0
        %1474 = vmatpush.msra.mxu0 0.0
        %1475 = vmatpush.msra.mxu0 0.0
        %1476 = vmatpush.msra.mxu0 0.0
        %1477 = vmatpush.msra.mxu0 0.0
        %1478 = vmatpush.msra.mxu0 0.0
        %1479 = vmatpush.msra.mxu0 0.0
        %1480 = vmatpush.msra.mxu0 0.0
        %1481 = vmatpush.msra.mxu0 0.0
        %1482 = vmatpush.msra.mxu0 0.0
        %1483 = vmatpush.msra.mxu0 0.0
        %1484 = vmatpush.msra.mxu0 0.0
        %1485 = vmatpush.msra.mxu0 0.0
        %1486 = vmatpush.msra.mxu0 0.0
        %1487 = vmatpush.msra.mxu0 0.0
        %1488 = vmatpush.msra.mxu0 0.0
        %v1489 = vand.u32 %v336, 4294901760
        %v1490 = vsub.f32 %v336, %v1489
        %v1491 = vand.u32 %v1490, 4294901760
        %1492 = vmatpush.msra.mxu0 %v1491
        %v1493 = vand.u32 %v371, 4294901760
        %1494 = vmatmul.f32.gmra.mxu0 %v1493
        %v1495 = vpop.f32.mrf.mxu0
        %v1496 = vadd.f32 %v1382, %v1495
        %v1497 = vand.u32 %v374, 4294901760
        %1498 = vmatmul.f32.gmra.mxu0 %v1497
        %v1499 = vpop.f32.mrf.mxu0
        %v1500 = vadd.f32 %v1388, %v1499
        %v1501 = vand.u32 %v377, 4294901760
        %1502 = vmatmul.f32.gmra.mxu0 %v1501
        %v1503 = vpop.f32.mrf.mxu0
        %v1504 = vadd.f32 %v1394, %v1503
        %v1505 = vand.u32 %v380, 4294901760
        %1506 = vmatmul.f32.gmra.mxu0 %v1505
        %v1507 = vpop.f32.mrf.mxu0
        %v1508 = vadd.f32 %v1400, %v1507
        %v1509 = vand.u32 %v383, 4294901760
        %1510 = vmatmul.f32.gmra.mxu0 %v1509
        %v1511 = vpop.f32.mrf.mxu0
        %v1512 = vadd.f32 %v1406, %v1511
        %v1513 = vand.u32 %v386, 4294901760
        %1514 = vmatmul.f32.gmra.mxu0 %v1513
        %v1515 = vpop.f32.mrf.mxu0
        %v1516 = vadd.f32 %v1412, %v1515
        %v1517 = vand.u32 %v389, 4294901760
        %1518 = vmatmul.f32.gmra.mxu0 %v1517
        %v1519 = vpop.f32.mrf.mxu0
        %v1520 = vadd.f32 %v1418, %v1519
        %v1521 = vand.u32 %v392, 4294901760
        %1522 = vmatmul.f32.gmra.mxu0 %v1521
        %v1523 = vpop.f32.mrf.mxu0
        %v1524 = vadd.f32 %v1424, %v1523
        %v1525 = vand.u32 %v395, 4294901760
        %1526 = vmatmul.f32.gmra.mxu0 %v1525
        %v1527 = vpop.f32.mrf.mxu0
        %v1528 = vadd.f32 %v1430, %v1527
        %v1529 = vand.u32 %v398, 4294901760
        %1530 = vmatmul.f32.gmra.mxu0 %v1529
        %v1531 = vpop.f32.mrf.mxu0
        %v1532 = vadd.f32 %v1436, %v1531
        %v1533 = vand.u32 %v401, 4294901760
        %1534 = vmatmul.f32.gmra.mxu0 %v1533
        %v1535 = vpop.f32.mrf.mxu0
        %v1536 = vadd.f32 %v1442, %v1535
        %v1537 = vand.u32 %v404, 4294901760
        %1538 = vmatmul.f32.gmra.mxu0 %v1537
        %v1539 = vpop.f32.mrf.mxu0
        %v1540 = vadd.f32 %v1448, %v1539
        %v1541 = vand.u32 %v407, 4294901760
        %1542 = vmatmul.f32.gmra.mxu0 %v1541
        %v1543 = vpop.f32.mrf.mxu0
        %v1544 = vadd.f32 %v1454, %v1543
        %v1545 = vand.u32 %v410, 4294901760
        %1546 = vmatmul.f32.gmra.mxu0 %v1545
        %v1547 = vpop.f32.mrf.mxu0
        %v1548 = vadd.f32 %v1460, %v1547
        %v1549 = vand.u32 %v413, 4294901760
        %1550 = vmatmul.f32.gmra.mxu0 %v1549
        %v1551 = vpop.f32.mrf.mxu0
        %v1552 = vadd.f32 %v1466, %v1551
        %v1553 = vand.u32 %v416, 4294901760
        %1554 = vmatmul.f32.gmra.mxu0 %v1553
        %v1555 = vpop.f32.mrf.mxu0
        %v1556 = vadd.f32 %v1472, %v1555
        %1557 = vdwg.mxu0
        %1558 = vmatpush.msra.mxu0 0.0
        %1559 = vmatpush.msra.mxu0 0.0
        %1560 = vmatpush.msra.mxu0 0.0
        %1561 = vmatpush.msra.mxu0 0.0
        %1562 = vmatpush.msra.mxu0 0.0
        %1563 = vmatpush.msra.mxu0 0.0
        %1564 = vmatpush.msra.mxu0 0.0
        %1565 = vmatpush.msra.mxu0 0.0
        %1566 = vmatpush.msra.mxu0 0.0
        %1567 = vmatpush.msra.mxu0 0.0
        %1568 = vmatpush.msra.mxu0 0.0
        %1569 = vmatpush.msra.mxu0 0.0
        %1570 = vmatpush.msra.mxu0 0.0
        %1571 = vmatpush.msra.mxu0 0.0
        %1572 = vmatpush.msra.mxu0 0.0
        %v1573 = vand.u32 %v336, 4294901760
        %1574 = vmatpush.msra.mxu0 %v1573
        %v1575 = vand.u32 %v371, 4294901760
        %1576 = vmatmul.f32.gmra.mxu0 %v1575
        %v1577 = vpop.f32.mrf.mxu0
        %v1578 = vadd.f32 %v1496, %v1577
        %v1579 = vand.u32 %v374, 4294901760
        %1580 = vmatmul.f32.gmra.mxu0 %v1579
        %v1581 = vpop.f32.mrf.mxu0
        %v1582 = vadd.f32 %v1500, %v1581
        %v1583 = vand.u32 %v377, 4294901760
        %1584 = vmatmul.f32.gmra.mxu0 %v1583
        %v1585 = vpop.f32.mrf.mxu0
        %v1586 = vadd.f32 %v1504, %v1585
        %v1587 = vand.u32 %v380, 4294901760
        %1588 = vmatmul.f32.gmra.mxu0 %v1587
        %v1589 = vpop.f32.mrf.mxu0
        %v1590 = vadd.f32 %v1508, %v1589
        %v1591 = vand.u32 %v383, 4294901760
        %1592 = vmatmul.f32.gmra.mxu0 %v1591
        %v1593 = vpop.f32.mrf.mxu0
        %v1594 = vadd.f32 %v1512, %v1593
        %v1595 = vand.u32 %v386, 4294901760
        %1596 = vmatmul.f32.gmra.mxu0 %v1595
        %v1597 = vpop.f32.mrf.mxu0
        %v1598 = vadd.f32 %v1516, %v1597
        %v1599 = vand.u32 %v389, 4294901760
        %1600 = vmatmul.f32.gmra.mxu0 %v1599
        %v1601 = vpop.f32.mrf.mxu0
        %v1602 = vadd.f32 %v1520, %v1601
        %v1603 = vand.u32 %v392, 4294901760
        %1604 = vmatmul.f32.gmra.mxu0 %v1603
        %v1605 = vpop.f32.mrf.mxu0
        %v1606 = vadd.f32 %v1524, %v1605
        %v1607 = vand.u32 %v395, 4294901760
        %1608 = vmatmul.f32.gmra.mxu0 %v1607
        %v1609 = vpop.f32.mrf.mxu0
        %v1610 = vadd.f32 %v1528, %v1609
        %v1611 = vand.u32 %v398, 4294901760
        %1612 = vmatmul.f32.gmra.mxu0 %v1611
        %v1613 = vpop.f32.mrf.mxu0
        %v1614 = vadd.f32 %v1532, %v1613
        %v1615 = vand.u32 %v401, 4294901760
        %1616 = vmatmul.f32.gmra.mxu0 %v1615
        %v1617 = vpop.f32.mrf.mxu0
        %v1618 = vadd.f32 %v1536, %v1617
        %v1619 = vand.u32 %v404, 4294901760
        %1620 = vmatmul.f32.gmra.mxu0 %v1619
        %v1621 = vpop.f32.mrf.mxu0
        %v1622 = vadd.f32 %v1540, %v1621
        %v1623 = vand.u32 %v407, 4294901760
        %1624 = vmatmul.f32.gmra.mxu0 %v1623
        %v1625 = vpop.f32.mrf.mxu0
        %v1626 = vadd.f32 %v1544, %v1625
        %v1627 = vand.u32 %v410, 4294901760
        %1628 = vmatmul.f32.gmra.mxu0 %v1627
        %v1629 = vpop.f32.mrf.mxu0
        %v1630 = vadd.f32 %v1548, %v1629
        %v1631 = vand.u32 %v413, 4294901760
        %1632 = vmatmul.f32.gmra.mxu0 %v1631
        %v1633 = vpop.f32.mrf.mxu0
        %v1634 = vadd.f32 %v1552, %v1633
        %v1635 = vand.u32 %v416, 4294901760
        %1636 = vmatmul.f32.gmra.mxu0 %v1635
        %v1637 = vpop.f32.mrf.mxu0
        %v1638 = vadd.f32 %v1556, %v1637
        %1639 = vdwg.mxu0
        %vm1640 = vcmask 261120
        %v1642 = vsel %vm1640, %v337, 0
        %v1645 = vsel %vm1640, %v338, 0
        %v1648 = vsel %vm1640, %v339, 0
        %v1651 = vsel %vm1640, %v340, 0
        %v1654 = vsel %vm1640, %v341, 0
        %v1657 = vsel %vm1640, %v342, 0
        %v1660 = vsel %vm1640, %v343, 0
        %v1663 = vsel %vm1640, %v344, 0
        %v1666 = vsel %vm1640, %v345, 0
        %v1669 = vsel %vm1640, %v346, 0
        %v1672 = vsel %vm1640, %v347, 0
        %v1675 = vsel %vm1640, %v348, 0
        %v1678 = vsel %vm1640, %v349, 0
        %v1681 = vsel %vm1640, %v350, 0
        %v1684 = vsel %vm1640, %v351, 0
        %v1687 = vsel %vm1640, %v352, 0
        %1689 = vmatpush.msra.mxu0 0.0
        %1690 = vmatpush.msra.mxu0 0.0
        %1691 = vmatpush.msra.mxu0 0.0
        %1692 = vmatpush.msra.mxu0 0.0
        %1693 = vmatpush.msra.mxu0 0.0
        %1694 = vmatpush.msra.mxu0 0.0
        %1695 = vmatpush.msra.mxu0 0.0
        %1696 = vmatpush.msra.mxu0 0.0
        %1697 = vmatpush.msra.mxu0 0.0
        %1698 = vmatpush.msra.mxu0 0.0
        %1699 = vmatpush.msra.mxu0 0.0
        %1700 = vmatpush.msra.mxu0 0.0
        %v1701 = vand.u32 %v327, 4294901760
        %1702 = vmatpush.msra.mxu0 %v1701
        %v1703 = vand.u32 %v325, 4294901760
        %1704 = vmatpush.msra.mxu0 %v1703
        %v1705 = vand.u32 %v323, 4294901760
        %1706 = vmatpush.msra.mxu0 %v1705
        %v1707 = vand.u32 %v321, 4294901760
        %1708 = vmatpush.msra.mxu0 %v1707
        %v1709 = vand.u32 %v1642, 4294901760
        %v1710 = vsub.f32 %v1642, %v1709
        %v1711 = vand.u32 %v1710, 4294901760
        %v1712 = vsub.f32 %v1710, %v1711
        %v1713 = vand.u32 %v1712, 4294901760
        %1714 = vmatmul.f32.gmra.mxu0 %v1713
        %v1715 = vpop.f32.mrf.mxu0
        %v1716 = vadd.f32 %v967, %v1715
        %v1717 = vand.u32 %v1645, 4294901760
        %v1718 = vsub.f32 %v1645, %v1717
        %v1719 = vand.u32 %v1718, 4294901760
        %v1720 = vsub.f32 %v1718, %v1719
        %v1721 = vand.u32 %v1720, 4294901760
        %1722 = vmatmul.f32.gmra.mxu0 %v1721
        %v1723 = vpop.f32.mrf.mxu0
        %v1724 = vadd.f32 %v971, %v1723
        %v1725 = vand.u32 %v1648, 4294901760
        %v1726 = vsub.f32 %v1648, %v1725
        %v1727 = vand.u32 %v1726, 4294901760
        %v1728 = vsub.f32 %v1726, %v1727
        %v1729 = vand.u32 %v1728, 4294901760
        %1730 = vmatmul.f32.gmra.mxu0 %v1729
        %v1731 = vpop.f32.mrf.mxu0
        %v1732 = vadd.f32 %v975, %v1731
        %v1733 = vand.u32 %v1651, 4294901760
        %v1734 = vsub.f32 %v1651, %v1733
        %v1735 = vand.u32 %v1734, 4294901760
        %v1736 = vsub.f32 %v1734, %v1735
        %v1737 = vand.u32 %v1736, 4294901760
        %1738 = vmatmul.f32.gmra.mxu0 %v1737
        %v1739 = vpop.f32.mrf.mxu0
        %v1740 = vadd.f32 %v979, %v1739
        %v1741 = vand.u32 %v1654, 4294901760
        %v1742 = vsub.f32 %v1654, %v1741
        %v1743 = vand.u32 %v1742, 4294901760
        %v1744 = vsub.f32 %v1742, %v1743
        %v1745 = vand.u32 %v1744, 4294901760
        %1746 = vmatmul.f32.gmra.mxu0 %v1745
        %v1747 = vpop.f32.mrf.mxu0
        %v1748 = vadd.f32 %v983, %v1747
        %v1749 = vand.u32 %v1657, 4294901760
        %v1750 = vsub.f32 %v1657, %v1749
        %v1751 = vand.u32 %v1750, 4294901760
        %v1752 = vsub.f32 %v1750, %v1751
        %v1753 = vand.u32 %v1752, 4294901760
        %1754 = vmatmul.f32.gmra.mxu0 %v1753
        %v1755 = vpop.f32.mrf.mxu0
        %v1756 = vadd.f32 %v987, %v1755
        %v1757 = vand.u32 %v1660, 4294901760
        %v1758 = vsub.f32 %v1660, %v1757
        %v1759 = vand.u32 %v1758, 4294901760
        %v1760 = vsub.f32 %v1758, %v1759
        %v1761 = vand.u32 %v1760, 4294901760
        %1762 = vmatmul.f32.gmra.mxu0 %v1761
        %v1763 = vpop.f32.mrf.mxu0
        %v1764 = vadd.f32 %v991, %v1763
        %v1765 = vand.u32 %v1663, 4294901760
        %v1766 = vsub.f32 %v1663, %v1765
        %v1767 = vand.u32 %v1766, 4294901760
        %v1768 = vsub.f32 %v1766, %v1767
        %v1769 = vand.u32 %v1768, 4294901760
        %1770 = vmatmul.f32.gmra.mxu0 %v1769
        %v1771 = vpop.f32.mrf.mxu0
        %v1772 = vadd.f32 %v995, %v1771
        %v1773 = vand.u32 %v1666, 4294901760
        %v1774 = vsub.f32 %v1666, %v1773
        %v1775 = vand.u32 %v1774, 4294901760
        %v1776 = vsub.f32 %v1774, %v1775
        %v1777 = vand.u32 %v1776, 4294901760
        %1778 = vmatmul.f32.gmra.mxu0 %v1777
        %v1779 = vpop.f32.mrf.mxu0
        %v1780 = vadd.f32 %v999, %v1779
        %v1781 = vand.u32 %v1669, 4294901760
        %v1782 = vsub.f32 %v1669, %v1781
        %v1783 = vand.u32 %v1782, 4294901760
        %v1784 = vsub.f32 %v1782, %v1783
        %v1785 = vand.u32 %v1784, 4294901760
        %1786 = vmatmul.f32.gmra.mxu0 %v1785
        %v1787 = vpop.f32.mrf.mxu0
        %v1788 = vadd.f32 %v1003, %v1787
        %v1789 = vand.u32 %v1672, 4294901760
        %v1790 = vsub.f32 %v1672, %v1789
        %v1791 = vand.u32 %v1790, 4294901760
        %v1792 = vsub.f32 %v1790, %v1791
        %v1793 = vand.u32 %v1792, 4294901760
        %1794 = vmatmul.f32.gmra.mxu0 %v1793
        %v1795 = vpop.f32.mrf.mxu0
        %v1796 = vadd.f32 %v1007, %v1795
        %v1797 = vand.u32 %v1675, 4294901760
        %v1798 = vsub.f32 %v1675, %v1797
        %v1799 = vand.u32 %v1798, 4294901760
        %v1800 = vsub.f32 %v1798, %v1799
        %v1801 = vand.u32 %v1800, 4294901760
        %1802 = vmatmul.f32.gmra.mxu0 %v1801
        %v1803 = vpop.f32.mrf.mxu0
        %v1804 = vadd.f32 %v1011, %v1803
        %v1805 = vand.u32 %v1678, 4294901760
        %v1806 = vsub.f32 %v1678, %v1805
        %v1807 = vand.u32 %v1806, 4294901760
        %v1808 = vsub.f32 %v1806, %v1807
        %v1809 = vand.u32 %v1808, 4294901760
        %1810 = vmatmul.f32.gmra.mxu0 %v1809
        %v1811 = vpop.f32.mrf.mxu0
        %v1812 = vadd.f32 %v1015, %v1811
        %v1813 = vand.u32 %v1681, 4294901760
        %v1814 = vsub.f32 %v1681, %v1813
        %v1815 = vand.u32 %v1814, 4294901760
        %v1816 = vsub.f32 %v1814, %v1815
        %v1817 = vand.u32 %v1816, 4294901760
        %1818 = vmatmul.f32.gmra.mxu0 %v1817
        %v1819 = vpop.f32.mrf.mxu0
        %v1820 = vadd.f32 %v1019, %v1819
        %v1821 = vand.u32 %v1684, 4294901760
        %v1822 = vsub.f32 %v1684, %v1821
        %v1823 = vand.u32 %v1822, 4294901760
        %v1824 = vsub.f32 %v1822, %v1823
        %v1825 = vand.u32 %v1824, 4294901760
        %1826 = vmatmul.f32.gmra.mxu0 %v1825
        %v1827 = vpop.f32.mrf.mxu0
        %v1828 = vadd.f32 %v1023, %v1827
        %v1829 = vand.u32 %v1687, 4294901760
        %v1830 = vsub.f32 %v1687, %v1829
        %v1831 = vand.u32 %v1830, 4294901760
        %v1832 = vsub.f32 %v1830, %v1831
        %v1833 = vand.u32 %v1832, 4294901760
        %1834 = vmatmul.f32.gmra.mxu0 %v1833
        %v1835 = vpop.f32.mrf.mxu0
        %v1836 = vadd.f32 %v1027, %v1835
        %1837 = vdwg.mxu0
        %1838 = vmatpush.msra.mxu0 0.0
        %1839 = vmatpush.msra.mxu0 0.0
        %1840 = vmatpush.msra.mxu0 0.0
        %1841 = vmatpush.msra.mxu0 0.0
        %1842 = vmatpush.msra.mxu0 0.0
        %1843 = vmatpush.msra.mxu0 0.0
        %1844 = vmatpush.msra.mxu0 0.0
        %1845 = vmatpush.msra.mxu0 0.0
        %1846 = vmatpush.msra.mxu0 0.0
        %1847 = vmatpush.msra.mxu0 0.0
        %1848 = vmatpush.msra.mxu0 0.0
        %1849 = vmatpush.msra.mxu0 0.0
        %v1850 = vand.u32 %v327, 4294901760
        %v1851 = vsub.f32 %v327, %v1850
        %v1852 = vand.u32 %v1851, 4294901760
        %v1853 = vsub.f32 %v1851, %v1852
        %v1854 = vand.u32 %v1853, 4294901760
        %1855 = vmatpush.msra.mxu0 %v1854
        %v1856 = vand.u32 %v325, 4294901760
        %v1857 = vsub.f32 %v325, %v1856
        %v1858 = vand.u32 %v1857, 4294901760
        %v1859 = vsub.f32 %v1857, %v1858
        %v1860 = vand.u32 %v1859, 4294901760
        %1861 = vmatpush.msra.mxu0 %v1860
        %v1862 = vand.u32 %v323, 4294901760
        %v1863 = vsub.f32 %v323, %v1862
        %v1864 = vand.u32 %v1863, 4294901760
        %v1865 = vsub.f32 %v1863, %v1864
        %v1866 = vand.u32 %v1865, 4294901760
        %1867 = vmatpush.msra.mxu0 %v1866
        %v1868 = vand.u32 %v321, 4294901760
        %v1869 = vsub.f32 %v321, %v1868
        %v1870 = vand.u32 %v1869, 4294901760
        %v1871 = vsub.f32 %v1869, %v1870
        %v1872 = vand.u32 %v1871, 4294901760
        %1873 = vmatpush.msra.mxu0 %v1872
        %v1874 = vand.u32 %v1642, 4294901760
        %1875 = vmatmul.f32.gmra.mxu0 %v1874
        %v1876 = vpop.f32.mrf.mxu0
        %v1877 = vadd.f32 %v1716, %v1876
        %v1878 = vand.u32 %v1645, 4294901760
        %1879 = vmatmul.f32.gmra.mxu0 %v1878
        %v1880 = vpop.f32.mrf.mxu0
        %v1881 = vadd.f32 %v1724, %v1880
        %v1882 = vand.u32 %v1648, 4294901760
        %1883 = vmatmul.f32.gmra.mxu0 %v1882
        %v1884 = vpop.f32.mrf.mxu0
        %v1885 = vadd.f32 %v1732, %v1884
        %v1886 = vand.u32 %v1651, 4294901760
        %1887 = vmatmul.f32.gmra.mxu0 %v1886
        %v1888 = vpop.f32.mrf.mxu0
        %v1889 = vadd.f32 %v1740, %v1888
        %v1890 = vand.u32 %v1654, 4294901760
        %1891 = vmatmul.f32.gmra.mxu0 %v1890
        %v1892 = vpop.f32.mrf.mxu0
        %v1893 = vadd.f32 %v1748, %v1892
        %v1894 = vand.u32 %v1657, 4294901760
        %1895 = vmatmul.f32.gmra.mxu0 %v1894
        %v1896 = vpop.f32.mrf.mxu0
        %v1897 = vadd.f32 %v1756, %v1896
        %v1898 = vand.u32 %v1660, 4294901760
        %1899 = vmatmul.f32.gmra.mxu0 %v1898
        %v1900 = vpop.f32.mrf.mxu0
        %v1901 = vadd.f32 %v1764, %v1900
        %v1902 = vand.u32 %v1663, 4294901760
        %1903 = vmatmul.f32.gmra.mxu0 %v1902
        %v1904 = vpop.f32.mrf.mxu0
        %v1905 = vadd.f32 %v1772, %v1904
        %v1906 = vand.u32 %v1666, 4294901760
        %1907 = vmatmul.f32.gmra.mxu0 %v1906
        %v1908 = vpop.f32.mrf.mxu0
        %v1909 = vadd.f32 %v1780, %v1908
        %v1910 = vand.u32 %v1669, 4294901760
        %1911 = vmatmul.f32.gmra.mxu0 %v1910
        %v1912 = vpop.f32.mrf.mxu0
        %v1913 = vadd.f32 %v1788, %v1912
        %v1914 = vand.u32 %v1672, 4294901760
        %1915 = vmatmul.f32.gmra.mxu0 %v1914
        %v1916 = vpop.f32.mrf.mxu0
        %v1917 = vadd.f32 %v1796, %v1916
        %v1918 = vand.u32 %v1675, 4294901760
        %1919 = vmatmul.f32.gmra.mxu0 %v1918
        %v1920 = vpop.f32.mrf.mxu0
        %v1921 = vadd.f32 %v1804, %v1920
        %v1922 = vand.u32 %v1678, 4294901760
        %1923 = vmatmul.f32.gmra.mxu0 %v1922
        %v1924 = vpop.f32.mrf.mxu0
        %v1925 = vadd.f32 %v1812, %v1924
        %v1926 = vand.u32 %v1681, 4294901760
        %1927 = vmatmul.f32.gmra.mxu0 %v1926
        %v1928 = vpop.f32.mrf.mxu0
        %v1929 = vadd.f32 %v1820, %v1928
        %v1930 = vand.u32 %v1684, 4294901760
        %1931 = vmatmul.f32.gmra.mxu0 %v1930
        %v1932 = vpop.f32.mrf.mxu0
        %v1933 = vadd.f32 %v1828, %v1932
        %v1934 = vand.u32 %v1687, 4294901760
        %1935 = vmatmul.f32.gmra.mxu0 %v1934
        %v1936 = vpop.f32.mrf.mxu0
        %v1937 = vadd.f32 %v1836, %v1936
        %1938 = vdwg.mxu0
        %1939 = vmatpush.msra.mxu0 0.0
        %1940 = vmatpush.msra.mxu0 0.0
        %1941 = vmatpush.msra.mxu0 0.0
        %1942 = vmatpush.msra.mxu0 0.0
        %1943 = vmatpush.msra.mxu0 0.0
        %1944 = vmatpush.msra.mxu0 0.0
        %1945 = vmatpush.msra.mxu0 0.0
        %1946 = vmatpush.msra.mxu0 0.0
        %1947 = vmatpush.msra.mxu0 0.0
        %1948 = vmatpush.msra.mxu0 0.0
        %1949 = vmatpush.msra.mxu0 0.0
        %1950 = vmatpush.msra.mxu0 0.0
        %v1951 = vand.u32 %v327, 4294901760
        %v1952 = vsub.f32 %v327, %v1951
        %1953 = vmatpush.msra.mxu0 %v1952
        %v1954 = vand.u32 %v325, 4294901760
        %v1955 = vsub.f32 %v325, %v1954
        %1956 = vmatpush.msra.mxu0 %v1955
        %v1957 = vand.u32 %v323, 4294901760
        %v1958 = vsub.f32 %v323, %v1957
        %1959 = vmatpush.msra.mxu0 %v1958
        %v1960 = vand.u32 %v321, 4294901760
        %v1961 = vsub.f32 %v321, %v1960
        %1962 = vmatpush.msra.mxu0 %v1961
        %v1963 = vand.u32 %v1642, 4294901760
        %v1964 = vsub.f32 %v1642, %v1963
        %1965 = vmatmul.f32.gmra.mxu0 %v1964
        %v1966 = vpop.f32.mrf.mxu0
        %v1967 = vadd.f32 %v1877, %v1966
        %v1968 = vand.u32 %v1645, 4294901760
        %v1969 = vsub.f32 %v1645, %v1968
        %1970 = vmatmul.f32.gmra.mxu0 %v1969
        %v1971 = vpop.f32.mrf.mxu0
        %v1972 = vadd.f32 %v1881, %v1971
        %v1973 = vand.u32 %v1648, 4294901760
        %v1974 = vsub.f32 %v1648, %v1973
        %1975 = vmatmul.f32.gmra.mxu0 %v1974
        %v1976 = vpop.f32.mrf.mxu0
        %v1977 = vadd.f32 %v1885, %v1976
        %v1978 = vand.u32 %v1651, 4294901760
        %v1979 = vsub.f32 %v1651, %v1978
        %1980 = vmatmul.f32.gmra.mxu0 %v1979
        %v1981 = vpop.f32.mrf.mxu0
        %v1982 = vadd.f32 %v1889, %v1981
        %v1983 = vand.u32 %v1654, 4294901760
        %v1984 = vsub.f32 %v1654, %v1983
        %1985 = vmatmul.f32.gmra.mxu0 %v1984
        %v1986 = vpop.f32.mrf.mxu0
        %v1987 = vadd.f32 %v1893, %v1986
        %v1988 = vand.u32 %v1657, 4294901760
        %v1989 = vsub.f32 %v1657, %v1988
        %1990 = vmatmul.f32.gmra.mxu0 %v1989
        %v1991 = vpop.f32.mrf.mxu0
        %v1992 = vadd.f32 %v1897, %v1991
        %v1993 = vand.u32 %v1660, 4294901760
        %v1994 = vsub.f32 %v1660, %v1993
        %1995 = vmatmul.f32.gmra.mxu0 %v1994
        %v1996 = vpop.f32.mrf.mxu0
        %v1997 = vadd.f32 %v1901, %v1996
        %v1998 = vand.u32 %v1663, 4294901760
        %v1999 = vsub.f32 %v1663, %v1998
        %2000 = vmatmul.f32.gmra.mxu0 %v1999
        %v2001 = vpop.f32.mrf.mxu0
        %v2002 = vadd.f32 %v1905, %v2001
        %v2003 = vand.u32 %v1666, 4294901760
        %v2004 = vsub.f32 %v1666, %v2003
        %2005 = vmatmul.f32.gmra.mxu0 %v2004
        %v2006 = vpop.f32.mrf.mxu0
        %v2007 = vadd.f32 %v1909, %v2006
        %v2008 = vand.u32 %v1669, 4294901760
        %v2009 = vsub.f32 %v1669, %v2008
        %2010 = vmatmul.f32.gmra.mxu0 %v2009
        %v2011 = vpop.f32.mrf.mxu0
        %v2012 = vadd.f32 %v1913, %v2011
        %v2013 = vand.u32 %v1672, 4294901760
        %v2014 = vsub.f32 %v1672, %v2013
        %2015 = vmatmul.f32.gmra.mxu0 %v2014
        %v2016 = vpop.f32.mrf.mxu0
        %v2017 = vadd.f32 %v1917, %v2016
        %v2018 = vand.u32 %v1675, 4294901760
        %v2019 = vsub.f32 %v1675, %v2018
        %2020 = vmatmul.f32.gmra.mxu0 %v2019
        %v2021 = vpop.f32.mrf.mxu0
        %v2022 = vadd.f32 %v1921, %v2021
        %v2023 = vand.u32 %v1678, 4294901760
        %v2024 = vsub.f32 %v1678, %v2023
        %2025 = vmatmul.f32.gmra.mxu0 %v2024
        %v2026 = vpop.f32.mrf.mxu0
        %v2027 = vadd.f32 %v1925, %v2026
        %v2028 = vand.u32 %v1681, 4294901760
        %v2029 = vsub.f32 %v1681, %v2028
        %2030 = vmatmul.f32.gmra.mxu0 %v2029
        %v2031 = vpop.f32.mrf.mxu0
        %v2032 = vadd.f32 %v1929, %v2031
        %v2033 = vand.u32 %v1684, 4294901760
        %v2034 = vsub.f32 %v1684, %v2033
        %2035 = vmatmul.f32.gmra.mxu0 %v2034
        %v2036 = vpop.f32.mrf.mxu0
        %v2037 = vadd.f32 %v1933, %v2036
        %v2038 = vand.u32 %v1687, 4294901760
        %v2039 = vsub.f32 %v1687, %v2038
        %2040 = vmatmul.f32.gmra.mxu0 %v2039
        %v2041 = vpop.f32.mrf.mxu0
        %v2042 = vadd.f32 %v1937, %v2041
        %2043 = vdwg.mxu0
        %2044 = vmatpush.msra.mxu0 0.0
        %2045 = vmatpush.msra.mxu0 0.0
        %2046 = vmatpush.msra.mxu0 0.0
        %2047 = vmatpush.msra.mxu0 0.0
        %2048 = vmatpush.msra.mxu0 0.0
        %2049 = vmatpush.msra.mxu0 0.0
        %2050 = vmatpush.msra.mxu0 0.0
        %2051 = vmatpush.msra.mxu0 0.0
        %2052 = vmatpush.msra.mxu0 0.0
        %2053 = vmatpush.msra.mxu0 0.0
        %2054 = vmatpush.msra.mxu0 0.0
        %2055 = vmatpush.msra.mxu0 0.0
        %v2056 = vand.u32 %v327, 4294901760
        %2057 = vmatpush.msra.mxu0 %v2056
        %v2058 = vand.u32 %v325, 4294901760
        %2059 = vmatpush.msra.mxu0 %v2058
        %v2060 = vand.u32 %v323, 4294901760
        %2061 = vmatpush.msra.mxu0 %v2060
        %v2062 = vand.u32 %v321, 4294901760
        %2063 = vmatpush.msra.mxu0 %v2062
        %v2064 = vand.u32 %v1642, 4294901760
        %v2065 = vsub.f32 %v1642, %v2064
        %v2066 = vand.u32 %v2065, 4294901760
        %2067 = vmatmul.f32.gmra.mxu0 %v2066
        %v2068 = vpop.f32.mrf.mxu0
        %v2069 = vadd.f32 %v1967, %v2068
        %v2070 = vand.u32 %v1645, 4294901760
        %v2071 = vsub.f32 %v1645, %v2070
        %v2072 = vand.u32 %v2071, 4294901760
        %2073 = vmatmul.f32.gmra.mxu0 %v2072
        %v2074 = vpop.f32.mrf.mxu0
        %v2075 = vadd.f32 %v1972, %v2074
        %v2076 = vand.u32 %v1648, 4294901760
        %v2077 = vsub.f32 %v1648, %v2076
        %v2078 = vand.u32 %v2077, 4294901760
        %2079 = vmatmul.f32.gmra.mxu0 %v2078
        %v2080 = vpop.f32.mrf.mxu0
        %v2081 = vadd.f32 %v1977, %v2080
        %v2082 = vand.u32 %v1651, 4294901760
        %v2083 = vsub.f32 %v1651, %v2082
        %v2084 = vand.u32 %v2083, 4294901760
        %2085 = vmatmul.f32.gmra.mxu0 %v2084
        %v2086 = vpop.f32.mrf.mxu0
        %v2087 = vadd.f32 %v1982, %v2086
        %v2088 = vand.u32 %v1654, 4294901760
        %v2089 = vsub.f32 %v1654, %v2088
        %v2090 = vand.u32 %v2089, 4294901760
        %2091 = vmatmul.f32.gmra.mxu0 %v2090
        %v2092 = vpop.f32.mrf.mxu0
        %v2093 = vadd.f32 %v1987, %v2092
        %v2094 = vand.u32 %v1657, 4294901760
        %v2095 = vsub.f32 %v1657, %v2094
        %v2096 = vand.u32 %v2095, 4294901760
        %2097 = vmatmul.f32.gmra.mxu0 %v2096
        %v2098 = vpop.f32.mrf.mxu0
        %v2099 = vadd.f32 %v1992, %v2098
        %v2100 = vand.u32 %v1660, 4294901760
        %v2101 = vsub.f32 %v1660, %v2100
        %v2102 = vand.u32 %v2101, 4294901760
        %2103 = vmatmul.f32.gmra.mxu0 %v2102
        %v2104 = vpop.f32.mrf.mxu0
        %v2105 = vadd.f32 %v1997, %v2104
        %v2106 = vand.u32 %v1663, 4294901760
        %v2107 = vsub.f32 %v1663, %v2106
        %v2108 = vand.u32 %v2107, 4294901760
        %2109 = vmatmul.f32.gmra.mxu0 %v2108
        %v2110 = vpop.f32.mrf.mxu0
        %v2111 = vadd.f32 %v2002, %v2110
        %v2112 = vand.u32 %v1666, 4294901760
        %v2113 = vsub.f32 %v1666, %v2112
        %v2114 = vand.u32 %v2113, 4294901760
        %2115 = vmatmul.f32.gmra.mxu0 %v2114
        %v2116 = vpop.f32.mrf.mxu0
        %v2117 = vadd.f32 %v2007, %v2116
        %v2118 = vand.u32 %v1669, 4294901760
        %v2119 = vsub.f32 %v1669, %v2118
        %v2120 = vand.u32 %v2119, 4294901760
        %2121 = vmatmul.f32.gmra.mxu0 %v2120
        %v2122 = vpop.f32.mrf.mxu0
        %v2123 = vadd.f32 %v2012, %v2122
        %v2124 = vand.u32 %v1672, 4294901760
        %v2125 = vsub.f32 %v1672, %v2124
        %v2126 = vand.u32 %v2125, 4294901760
        %2127 = vmatmul.f32.gmra.mxu0 %v2126
        %v2128 = vpop.f32.mrf.mxu0
        %v2129 = vadd.f32 %v2017, %v2128
        %v2130 = vand.u32 %v1675, 4294901760
        %v2131 = vsub.f32 %v1675, %v2130
        %v2132 = vand.u32 %v2131, 4294901760
        %2133 = vmatmul.f32.gmra.mxu0 %v2132
        %v2134 = vpop.f32.mrf.mxu0
        %v2135 = vadd.f32 %v2022, %v2134
        %v2136 = vand.u32 %v1678, 4294901760
        %v2137 = vsub.f32 %v1678, %v2136
        %v2138 = vand.u32 %v2137, 4294901760
        %2139 = vmatmul.f32.gmra.mxu0 %v2138
        %v2140 = vpop.f32.mrf.mxu0
        %v2141 = vadd.f32 %v2027, %v2140
        %v2142 = vand.u32 %v1681, 4294901760
        %v2143 = vsub.f32 %v1681, %v2142
        %v2144 = vand.u32 %v2143, 4294901760
        %2145 = vmatmul.f32.gmra.mxu0 %v2144
        %v2146 = vpop.f32.mrf.mxu0
        %v2147 = vadd.f32 %v2032, %v2146
        %v2148 = vand.u32 %v1684, 4294901760
        %v2149 = vsub.f32 %v1684, %v2148
        %v2150 = vand.u32 %v2149, 4294901760
        %2151 = vmatmul.f32.gmra.mxu0 %v2150
        %v2152 = vpop.f32.mrf.mxu0
        %v2153 = vadd.f32 %v2037, %v2152
        %v2154 = vand.u32 %v1687, 4294901760
        %v2155 = vsub.f32 %v1687, %v2154
        %v2156 = vand.u32 %v2155, 4294901760
        %2157 = vmatmul.f32.gmra.mxu0 %v2156
        %v2158 = vpop.f32.mrf.mxu0
        %v2159 = vadd.f32 %v2042, %v2158
        %2160 = vdwg.mxu0
        %2161 = vmatpush.msra.mxu0 0.0
        %2162 = vmatpush.msra.mxu0 0.0
        %2163 = vmatpush.msra.mxu0 0.0
        %2164 = vmatpush.msra.mxu0 0.0
        %2165 = vmatpush.msra.mxu0 0.0
        %2166 = vmatpush.msra.mxu0 0.0
        %2167 = vmatpush.msra.mxu0 0.0
        %2168 = vmatpush.msra.mxu0 0.0
        %2169 = vmatpush.msra.mxu0 0.0
        %2170 = vmatpush.msra.mxu0 0.0
        %2171 = vmatpush.msra.mxu0 0.0
        %2172 = vmatpush.msra.mxu0 0.0
        %v2173 = vand.u32 %v327, 4294901760
        %v2174 = vsub.f32 %v327, %v2173
        %v2175 = vand.u32 %v2174, 4294901760
        %2176 = vmatpush.msra.mxu0 %v2175
        %v2177 = vand.u32 %v325, 4294901760
        %v2178 = vsub.f32 %v325, %v2177
        %v2179 = vand.u32 %v2178, 4294901760
        %2180 = vmatpush.msra.mxu0 %v2179
        %v2181 = vand.u32 %v323, 4294901760
        %v2182 = vsub.f32 %v323, %v2181
        %v2183 = vand.u32 %v2182, 4294901760
        %2184 = vmatpush.msra.mxu0 %v2183
        %v2185 = vand.u32 %v321, 4294901760
        %v2186 = vsub.f32 %v321, %v2185
        %v2187 = vand.u32 %v2186, 4294901760
        %2188 = vmatpush.msra.mxu0 %v2187
        %v2189 = vand.u32 %v1642, 4294901760
        %2190 = vmatmul.f32.gmra.mxu0 %v2189
        %v2191 = vpop.f32.mrf.mxu0
        %v2192 = vadd.f32 %v2069, %v2191
        %v2193 = vand.u32 %v1645, 4294901760
        %2194 = vmatmul.f32.gmra.mxu0 %v2193
        %v2195 = vpop.f32.mrf.mxu0
        %v2196 = vadd.f32 %v2075, %v2195
        %v2197 = vand.u32 %v1648, 4294901760
        %2198 = vmatmul.f32.gmra.mxu0 %v2197
        %v2199 = vpop.f32.mrf.mxu0
        %v2200 = vadd.f32 %v2081, %v2199
        %v2201 = vand.u32 %v1651, 4294901760
        %2202 = vmatmul.f32.gmra.mxu0 %v2201
        %v2203 = vpop.f32.mrf.mxu0
        %v2204 = vadd.f32 %v2087, %v2203
        %v2205 = vand.u32 %v1654, 4294901760
        %2206 = vmatmul.f32.gmra.mxu0 %v2205
        %v2207 = vpop.f32.mrf.mxu0
        %v2208 = vadd.f32 %v2093, %v2207
        %v2209 = vand.u32 %v1657, 4294901760
        %2210 = vmatmul.f32.gmra.mxu0 %v2209
        %v2211 = vpop.f32.mrf.mxu0
        %v2212 = vadd.f32 %v2099, %v2211
        %v2213 = vand.u32 %v1660, 4294901760
        %2214 = vmatmul.f32.gmra.mxu0 %v2213
        %v2215 = vpop.f32.mrf.mxu0
        %v2216 = vadd.f32 %v2105, %v2215
        %v2217 = vand.u32 %v1663, 4294901760
        %2218 = vmatmul.f32.gmra.mxu0 %v2217
        %v2219 = vpop.f32.mrf.mxu0
        %v2220 = vadd.f32 %v2111, %v2219
        %v2221 = vand.u32 %v1666, 4294901760
        %2222 = vmatmul.f32.gmra.mxu0 %v2221
        %v2223 = vpop.f32.mrf.mxu0
        %v2224 = vadd.f32 %v2117, %v2223
        %v2225 = vand.u32 %v1669, 4294901760
        %2226 = vmatmul.f32.gmra.mxu0 %v2225
        %v2227 = vpop.f32.mrf.mxu0
        %v2228 = vadd.f32 %v2123, %v2227
        %v2229 = vand.u32 %v1672, 4294901760
        %2230 = vmatmul.f32.gmra.mxu0 %v2229
        %v2231 = vpop.f32.mrf.mxu0
        %v2232 = vadd.f32 %v2129, %v2231
        %v2233 = vand.u32 %v1675, 4294901760
        %2234 = vmatmul.f32.gmra.mxu0 %v2233
        %v2235 = vpop.f32.mrf.mxu0
        %v2236 = vadd.f32 %v2135, %v2235
        %v2237 = vand.u32 %v1678, 4294901760
        %2238 = vmatmul.f32.gmra.mxu0 %v2237
        %v2239 = vpop.f32.mrf.mxu0
        %v2240 = vadd.f32 %v2141, %v2239
        %v2241 = vand.u32 %v1681, 4294901760
        %2242 = vmatmul.f32.gmra.mxu0 %v2241
        %v2243 = vpop.f32.mrf.mxu0
        %v2244 = vadd.f32 %v2147, %v2243
        %v2245 = vand.u32 %v1684, 4294901760
        %2246 = vmatmul.f32.gmra.mxu0 %v2245
        %v2247 = vpop.f32.mrf.mxu0
        %v2248 = vadd.f32 %v2153, %v2247
        %v2249 = vand.u32 %v1687, 4294901760
        %2250 = vmatmul.f32.gmra.mxu0 %v2249
        %v2251 = vpop.f32.mrf.mxu0
        %v2252 = vadd.f32 %v2159, %v2251
        %2253 = vdwg.mxu0
        %2254 = vmatpush.msra.mxu0 0.0
        %2255 = vmatpush.msra.mxu0 0.0
        %2256 = vmatpush.msra.mxu0 0.0
        %2257 = vmatpush.msra.mxu0 0.0
        %2258 = vmatpush.msra.mxu0 0.0
        %2259 = vmatpush.msra.mxu0 0.0
        %2260 = vmatpush.msra.mxu0 0.0
        %2261 = vmatpush.msra.mxu0 0.0
        %2262 = vmatpush.msra.mxu0 0.0
        %2263 = vmatpush.msra.mxu0 0.0
        %2264 = vmatpush.msra.mxu0 0.0
        %2265 = vmatpush.msra.mxu0 0.0
        %v2266 = vand.u32 %v327, 4294901760
        %2267 = vmatpush.msra.mxu0 %v2266
        %v2268 = vand.u32 %v325, 4294901760
        %2269 = vmatpush.msra.mxu0 %v2268
        %v2270 = vand.u32 %v323, 4294901760
        %2271 = vmatpush.msra.mxu0 %v2270
        %v2272 = vand.u32 %v321, 4294901760
        %2273 = vmatpush.msra.mxu0 %v2272
        %v2274 = vand.u32 %v1642, 4294901760
        %2275 = vmatmul.f32.gmra.mxu0 %v2274
        %v2276 = vpop.f32.mrf.mxu0
        %v2277 = vadd.f32 %v2192, %v2276
        %v2278 = vand.u32 %v1645, 4294901760
        %2279 = vmatmul.f32.gmra.mxu0 %v2278
        %v2280 = vpop.f32.mrf.mxu0
        %v2281 = vadd.f32 %v2196, %v2280
        %v2282 = vand.u32 %v1648, 4294901760
        %2283 = vmatmul.f32.gmra.mxu0 %v2282
        %v2284 = vpop.f32.mrf.mxu0
        %v2285 = vadd.f32 %v2200, %v2284
        %v2286 = vand.u32 %v1651, 4294901760
        %2287 = vmatmul.f32.gmra.mxu0 %v2286
        %v2288 = vpop.f32.mrf.mxu0
        %v2289 = vadd.f32 %v2204, %v2288
        %v2290 = vand.u32 %v1654, 4294901760
        %2291 = vmatmul.f32.gmra.mxu0 %v2290
        %v2292 = vpop.f32.mrf.mxu0
        %v2293 = vadd.f32 %v2208, %v2292
        %v2294 = vand.u32 %v1657, 4294901760
        %2295 = vmatmul.f32.gmra.mxu0 %v2294
        %v2296 = vpop.f32.mrf.mxu0
        %v2297 = vadd.f32 %v2212, %v2296
        %v2298 = vand.u32 %v1660, 4294901760
        %2299 = vmatmul.f32.gmra.mxu0 %v2298
        %v2300 = vpop.f32.mrf.mxu0
        %v2301 = vadd.f32 %v2216, %v2300
        %v2302 = vand.u32 %v1663, 4294901760
        %2303 = vmatmul.f32.gmra.mxu0 %v2302
        %v2304 = vpop.f32.mrf.mxu0
        %v2305 = vadd.f32 %v2220, %v2304
        %v2306 = vand.u32 %v1666, 4294901760
        %2307 = vmatmul.f32.gmra.mxu0 %v2306
        %v2308 = vpop.f32.mrf.mxu0
        %v2309 = vadd.f32 %v2224, %v2308
        %v2310 = vand.u32 %v1669, 4294901760
        %2311 = vmatmul.f32.gmra.mxu0 %v2310
        %v2312 = vpop.f32.mrf.mxu0
        %v2313 = vadd.f32 %v2228, %v2312
        %v2314 = vand.u32 %v1672, 4294901760
        %2315 = vmatmul.f32.gmra.mxu0 %v2314
        %v2316 = vpop.f32.mrf.mxu0
        %v2317 = vadd.f32 %v2232, %v2316
        %v2318 = vand.u32 %v1675, 4294901760
        %2319 = vmatmul.f32.gmra.mxu0 %v2318
        %v2320 = vpop.f32.mrf.mxu0
        %v2321 = vadd.f32 %v2236, %v2320
        %v2322 = vand.u32 %v1678, 4294901760
        %2323 = vmatmul.f32.gmra.mxu0 %v2322
        %v2324 = vpop.f32.mrf.mxu0
        %v2325 = vadd.f32 %v2240, %v2324
        %v2326 = vand.u32 %v1681, 4294901760
        %2327 = vmatmul.f32.gmra.mxu0 %v2326
        %v2328 = vpop.f32.mrf.mxu0
        %v2329 = vadd.f32 %v2244, %v2328
        %v2330 = vand.u32 %v1684, 4294901760
        %2331 = vmatmul.f32.gmra.mxu0 %v2330
        %v2332 = vpop.f32.mrf.mxu0
        %v2333 = vadd.f32 %v2248, %v2332
        %v2334 = vand.u32 %v1687, 4294901760
        %2335 = vmatmul.f32.gmra.mxu0 %v2334
        %v2336 = vpop.f32.mrf.mxu0
        %v2337 = vadd.f32 %v2252, %v2336
        %2338 = vdwg.mxu0
        %2339 = vmatpush.msra.mxu0 0.0
        %2340 = vmatpush.msra.mxu0 0.0
        %2341 = vmatpush.msra.mxu0 0.0
        %2342 = vmatpush.msra.mxu0 0.0
        %2343 = vmatpush.msra.mxu0 0.0
        %2344 = vmatpush.msra.mxu0 0.0
        %2345 = vmatpush.msra.mxu0 0.0
        %2346 = vmatpush.msra.mxu0 0.0
        %2347 = vmatpush.msra.mxu0 0.0
        %2348 = vmatpush.msra.mxu0 0.0
        %2349 = vmatpush.msra.mxu0 0.0
        %2350 = vmatpush.msra.mxu0 0.0
        %v2351 = vand.u32 %v328, 4294901760
        %2352 = vmatpush.msra.mxu0 %v2351
        %v2353 = vand.u32 %v326, 4294901760
        %2354 = vmatpush.msra.mxu0 %v2353
        %v2355 = vand.u32 %v324, 4294901760
        %2356 = vmatpush.msra.mxu0 %v2355
        %v2357 = vand.u32 %v322, 4294901760
        %2358 = vmatpush.msra.mxu0 %v2357
        %v2359 = vand.u32 %v1642, 4294901760
        %v2360 = vsub.f32 %v1642, %v2359
        %v2361 = vand.u32 %v2360, 4294901760
        %v2362 = vsub.f32 %v2360, %v2361
        %v2363 = vand.u32 %v2362, 4294901760
        %2364 = vmatmul.f32.gmra.mxu0 %v2363
        %v2365 = vpop.f32.mrf.mxu0
        %v2366 = vadd.f32 %v1578, %v2365
        %v2367 = vand.u32 %v1645, 4294901760
        %v2368 = vsub.f32 %v1645, %v2367
        %v2369 = vand.u32 %v2368, 4294901760
        %v2370 = vsub.f32 %v2368, %v2369
        %v2371 = vand.u32 %v2370, 4294901760
        %2372 = vmatmul.f32.gmra.mxu0 %v2371
        %v2373 = vpop.f32.mrf.mxu0
        %v2374 = vadd.f32 %v1582, %v2373
        %v2375 = vand.u32 %v1648, 4294901760
        %v2376 = vsub.f32 %v1648, %v2375
        %v2377 = vand.u32 %v2376, 4294901760
        %v2378 = vsub.f32 %v2376, %v2377
        %v2379 = vand.u32 %v2378, 4294901760
        %2380 = vmatmul.f32.gmra.mxu0 %v2379
        %v2381 = vpop.f32.mrf.mxu0
        %v2382 = vadd.f32 %v1586, %v2381
        %v2383 = vand.u32 %v1651, 4294901760
        %v2384 = vsub.f32 %v1651, %v2383
        %v2385 = vand.u32 %v2384, 4294901760
        %v2386 = vsub.f32 %v2384, %v2385
        %v2387 = vand.u32 %v2386, 4294901760
        %2388 = vmatmul.f32.gmra.mxu0 %v2387
        %v2389 = vpop.f32.mrf.mxu0
        %v2390 = vadd.f32 %v1590, %v2389
        %v2391 = vand.u32 %v1654, 4294901760
        %v2392 = vsub.f32 %v1654, %v2391
        %v2393 = vand.u32 %v2392, 4294901760
        %v2394 = vsub.f32 %v2392, %v2393
        %v2395 = vand.u32 %v2394, 4294901760
        %2396 = vmatmul.f32.gmra.mxu0 %v2395
        %v2397 = vpop.f32.mrf.mxu0
        %v2398 = vadd.f32 %v1594, %v2397
        %v2399 = vand.u32 %v1657, 4294901760
        %v2400 = vsub.f32 %v1657, %v2399
        %v2401 = vand.u32 %v2400, 4294901760
        %v2402 = vsub.f32 %v2400, %v2401
        %v2403 = vand.u32 %v2402, 4294901760
        %2404 = vmatmul.f32.gmra.mxu0 %v2403
        %v2405 = vpop.f32.mrf.mxu0
        %v2406 = vadd.f32 %v1598, %v2405
        %v2407 = vand.u32 %v1660, 4294901760
        %v2408 = vsub.f32 %v1660, %v2407
        %v2409 = vand.u32 %v2408, 4294901760
        %v2410 = vsub.f32 %v2408, %v2409
        %v2411 = vand.u32 %v2410, 4294901760
        %2412 = vmatmul.f32.gmra.mxu0 %v2411
        %v2413 = vpop.f32.mrf.mxu0
        %v2414 = vadd.f32 %v1602, %v2413
        %v2415 = vand.u32 %v1663, 4294901760
        %v2416 = vsub.f32 %v1663, %v2415
        %v2417 = vand.u32 %v2416, 4294901760
        %v2418 = vsub.f32 %v2416, %v2417
        %v2419 = vand.u32 %v2418, 4294901760
        %2420 = vmatmul.f32.gmra.mxu0 %v2419
        %v2421 = vpop.f32.mrf.mxu0
        %v2422 = vadd.f32 %v1606, %v2421
        %v2423 = vand.u32 %v1666, 4294901760
        %v2424 = vsub.f32 %v1666, %v2423
        %v2425 = vand.u32 %v2424, 4294901760
        %v2426 = vsub.f32 %v2424, %v2425
        %v2427 = vand.u32 %v2426, 4294901760
        %2428 = vmatmul.f32.gmra.mxu0 %v2427
        %v2429 = vpop.f32.mrf.mxu0
        %v2430 = vadd.f32 %v1610, %v2429
        %v2431 = vand.u32 %v1669, 4294901760
        %v2432 = vsub.f32 %v1669, %v2431
        %v2433 = vand.u32 %v2432, 4294901760
        %v2434 = vsub.f32 %v2432, %v2433
        %v2435 = vand.u32 %v2434, 4294901760
        %2436 = vmatmul.f32.gmra.mxu0 %v2435
        %v2437 = vpop.f32.mrf.mxu0
        %v2438 = vadd.f32 %v1614, %v2437
        %v2439 = vand.u32 %v1672, 4294901760
        %v2440 = vsub.f32 %v1672, %v2439
        %v2441 = vand.u32 %v2440, 4294901760
        %v2442 = vsub.f32 %v2440, %v2441
        %v2443 = vand.u32 %v2442, 4294901760
        %2444 = vmatmul.f32.gmra.mxu0 %v2443
        %v2445 = vpop.f32.mrf.mxu0
        %v2446 = vadd.f32 %v1618, %v2445
        %v2447 = vand.u32 %v1675, 4294901760
        %v2448 = vsub.f32 %v1675, %v2447
        %v2449 = vand.u32 %v2448, 4294901760
        %v2450 = vsub.f32 %v2448, %v2449
        %v2451 = vand.u32 %v2450, 4294901760
        %2452 = vmatmul.f32.gmra.mxu0 %v2451
        %v2453 = vpop.f32.mrf.mxu0
        %v2454 = vadd.f32 %v1622, %v2453
        %v2455 = vand.u32 %v1678, 4294901760
        %v2456 = vsub.f32 %v1678, %v2455
        %v2457 = vand.u32 %v2456, 4294901760
        %v2458 = vsub.f32 %v2456, %v2457
        %v2459 = vand.u32 %v2458, 4294901760
        %2460 = vmatmul.f32.gmra.mxu0 %v2459
        %v2461 = vpop.f32.mrf.mxu0
        %v2462 = vadd.f32 %v1626, %v2461
        %v2463 = vand.u32 %v1681, 4294901760
        %v2464 = vsub.f32 %v1681, %v2463
        %v2465 = vand.u32 %v2464, 4294901760
        %v2466 = vsub.f32 %v2464, %v2465
        %v2467 = vand.u32 %v2466, 4294901760
        %2468 = vmatmul.f32.gmra.mxu0 %v2467
        %v2469 = vpop.f32.mrf.mxu0
        %v2470 = vadd.f32 %v1630, %v2469
        %v2471 = vand.u32 %v1684, 4294901760
        %v2472 = vsub.f32 %v1684, %v2471
        %v2473 = vand.u32 %v2472, 4294901760
        %v2474 = vsub.f32 %v2472, %v2473
        %v2475 = vand.u32 %v2474, 4294901760
        %2476 = vmatmul.f32.gmra.mxu0 %v2475
        %v2477 = vpop.f32.mrf.mxu0
        %v2478 = vadd.f32 %v1634, %v2477
        %v2479 = vand.u32 %v1687, 4294901760
        %v2480 = vsub.f32 %v1687, %v2479
        %v2481 = vand.u32 %v2480, 4294901760
        %v2482 = vsub.f32 %v2480, %v2481
        %v2483 = vand.u32 %v2482, 4294901760
        %2484 = vmatmul.f32.gmra.mxu0 %v2483
        %v2485 = vpop.f32.mrf.mxu0
        %v2486 = vadd.f32 %v1638, %v2485
        %2487 = vdwg.mxu0
        %2488 = vmatpush.msra.mxu0 0.0
        %2489 = vmatpush.msra.mxu0 0.0
        %2490 = vmatpush.msra.mxu0 0.0
        %2491 = vmatpush.msra.mxu0 0.0
        %2492 = vmatpush.msra.mxu0 0.0
        %2493 = vmatpush.msra.mxu0 0.0
        %2494 = vmatpush.msra.mxu0 0.0
        %2495 = vmatpush.msra.mxu0 0.0
        %2496 = vmatpush.msra.mxu0 0.0
        %2497 = vmatpush.msra.mxu0 0.0
        %2498 = vmatpush.msra.mxu0 0.0
        %2499 = vmatpush.msra.mxu0 0.0
        %v2500 = vand.u32 %v328, 4294901760
        %v2501 = vsub.f32 %v328, %v2500
        %v2502 = vand.u32 %v2501, 4294901760
        %v2503 = vsub.f32 %v2501, %v2502
        %v2504 = vand.u32 %v2503, 4294901760
        %2505 = vmatpush.msra.mxu0 %v2504
        %v2506 = vand.u32 %v326, 4294901760
        %v2507 = vsub.f32 %v326, %v2506
        %v2508 = vand.u32 %v2507, 4294901760
        %v2509 = vsub.f32 %v2507, %v2508
        %v2510 = vand.u32 %v2509, 4294901760
        %2511 = vmatpush.msra.mxu0 %v2510
        %v2512 = vand.u32 %v324, 4294901760
        %v2513 = vsub.f32 %v324, %v2512
        %v2514 = vand.u32 %v2513, 4294901760
        %v2515 = vsub.f32 %v2513, %v2514
        %v2516 = vand.u32 %v2515, 4294901760
        %2517 = vmatpush.msra.mxu0 %v2516
        %v2518 = vand.u32 %v322, 4294901760
        %v2519 = vsub.f32 %v322, %v2518
        %v2520 = vand.u32 %v2519, 4294901760
        %v2521 = vsub.f32 %v2519, %v2520
        %v2522 = vand.u32 %v2521, 4294901760
        %2523 = vmatpush.msra.mxu0 %v2522
        %v2524 = vand.u32 %v1642, 4294901760
        %2525 = vmatmul.f32.gmra.mxu0 %v2524
        %v2526 = vpop.f32.mrf.mxu0
        %v2527 = vadd.f32 %v2366, %v2526
        %v2528 = vand.u32 %v1645, 4294901760
        %2529 = vmatmul.f32.gmra.mxu0 %v2528
        %v2530 = vpop.f32.mrf.mxu0
        %v2531 = vadd.f32 %v2374, %v2530
        %v2532 = vand.u32 %v1648, 4294901760
        %2533 = vmatmul.f32.gmra.mxu0 %v2532
        %v2534 = vpop.f32.mrf.mxu0
        %v2535 = vadd.f32 %v2382, %v2534
        %v2536 = vand.u32 %v1651, 4294901760
        %2537 = vmatmul.f32.gmra.mxu0 %v2536
        %v2538 = vpop.f32.mrf.mxu0
        %v2539 = vadd.f32 %v2390, %v2538
        %v2540 = vand.u32 %v1654, 4294901760
        %2541 = vmatmul.f32.gmra.mxu0 %v2540
        %v2542 = vpop.f32.mrf.mxu0
        %v2543 = vadd.f32 %v2398, %v2542
        %v2544 = vand.u32 %v1657, 4294901760
        %2545 = vmatmul.f32.gmra.mxu0 %v2544
        %v2546 = vpop.f32.mrf.mxu0
        %v2547 = vadd.f32 %v2406, %v2546
        %v2548 = vand.u32 %v1660, 4294901760
        %2549 = vmatmul.f32.gmra.mxu0 %v2548
        %v2550 = vpop.f32.mrf.mxu0
        %v2551 = vadd.f32 %v2414, %v2550
        %v2552 = vand.u32 %v1663, 4294901760
        %2553 = vmatmul.f32.gmra.mxu0 %v2552
        %v2554 = vpop.f32.mrf.mxu0
        %v2555 = vadd.f32 %v2422, %v2554
        %v2556 = vand.u32 %v1666, 4294901760
        %2557 = vmatmul.f32.gmra.mxu0 %v2556
        %v2558 = vpop.f32.mrf.mxu0
        %v2559 = vadd.f32 %v2430, %v2558
        %v2560 = vand.u32 %v1669, 4294901760
        %2561 = vmatmul.f32.gmra.mxu0 %v2560
        %v2562 = vpop.f32.mrf.mxu0
        %v2563 = vadd.f32 %v2438, %v2562
        %v2564 = vand.u32 %v1672, 4294901760
        %2565 = vmatmul.f32.gmra.mxu0 %v2564
        %v2566 = vpop.f32.mrf.mxu0
        %v2567 = vadd.f32 %v2446, %v2566
        %v2568 = vand.u32 %v1675, 4294901760
        %2569 = vmatmul.f32.gmra.mxu0 %v2568
        %v2570 = vpop.f32.mrf.mxu0
        %v2571 = vadd.f32 %v2454, %v2570
        %v2572 = vand.u32 %v1678, 4294901760
        %2573 = vmatmul.f32.gmra.mxu0 %v2572
        %v2574 = vpop.f32.mrf.mxu0
        %v2575 = vadd.f32 %v2462, %v2574
        %v2576 = vand.u32 %v1681, 4294901760
        %2577 = vmatmul.f32.gmra.mxu0 %v2576
        %v2578 = vpop.f32.mrf.mxu0
        %v2579 = vadd.f32 %v2470, %v2578
        %v2580 = vand.u32 %v1684, 4294901760
        %2581 = vmatmul.f32.gmra.mxu0 %v2580
        %v2582 = vpop.f32.mrf.mxu0
        %v2583 = vadd.f32 %v2478, %v2582
        %v2584 = vand.u32 %v1687, 4294901760
        %2585 = vmatmul.f32.gmra.mxu0 %v2584
        %v2586 = vpop.f32.mrf.mxu0
        %v2587 = vadd.f32 %v2486, %v2586
        %2588 = vdwg.mxu0
        %2589 = vmatpush.msra.mxu0 0.0
        %2590 = vmatpush.msra.mxu0 0.0
        %2591 = vmatpush.msra.mxu0 0.0
        %2592 = vmatpush.msra.mxu0 0.0
        %2593 = vmatpush.msra.mxu0 0.0
        %2594 = vmatpush.msra.mxu0 0.0
        %2595 = vmatpush.msra.mxu0 0.0
        %2596 = vmatpush.msra.mxu0 0.0
        %2597 = vmatpush.msra.mxu0 0.0
        %2598 = vmatpush.msra.mxu0 0.0
        %2599 = vmatpush.msra.mxu0 0.0
        %2600 = vmatpush.msra.mxu0 0.0
        %v2601 = vand.u32 %v328, 4294901760
        %v2602 = vsub.f32 %v328, %v2601
        %2603 = vmatpush.msra.mxu0 %v2602
        %v2604 = vand.u32 %v326, 4294901760
        %v2605 = vsub.f32 %v326, %v2604
        %2606 = vmatpush.msra.mxu0 %v2605
        %v2607 = vand.u32 %v324, 4294901760
        %v2608 = vsub.f32 %v324, %v2607
        %2609 = vmatpush.msra.mxu0 %v2608
        %v2610 = vand.u32 %v322, 4294901760
        %v2611 = vsub.f32 %v322, %v2610
        %2612 = vmatpush.msra.mxu0 %v2611
        %v2613 = vand.u32 %v1642, 4294901760
        %v2614 = vsub.f32 %v1642, %v2613
        %2615 = vmatmul.f32.gmra.mxu0 %v2614
        %v2616 = vpop.f32.mrf.mxu0
        %v2617 = vadd.f32 %v2527, %v2616
        %v2618 = vand.u32 %v1645, 4294901760
        %v2619 = vsub.f32 %v1645, %v2618
        %2620 = vmatmul.f32.gmra.mxu0 %v2619
        %v2621 = vpop.f32.mrf.mxu0
        %v2622 = vadd.f32 %v2531, %v2621
        %v2623 = vand.u32 %v1648, 4294901760
        %v2624 = vsub.f32 %v1648, %v2623
        %2625 = vmatmul.f32.gmra.mxu0 %v2624
        %v2626 = vpop.f32.mrf.mxu0
        %v2627 = vadd.f32 %v2535, %v2626
        %v2628 = vand.u32 %v1651, 4294901760
        %v2629 = vsub.f32 %v1651, %v2628
        %2630 = vmatmul.f32.gmra.mxu0 %v2629
        %v2631 = vpop.f32.mrf.mxu0
        %v2632 = vadd.f32 %v2539, %v2631
        %v2633 = vand.u32 %v1654, 4294901760
        %v2634 = vsub.f32 %v1654, %v2633
        %2635 = vmatmul.f32.gmra.mxu0 %v2634
        %v2636 = vpop.f32.mrf.mxu0
        %v2637 = vadd.f32 %v2543, %v2636
        %v2638 = vand.u32 %v1657, 4294901760
        %v2639 = vsub.f32 %v1657, %v2638
        %2640 = vmatmul.f32.gmra.mxu0 %v2639
        %v2641 = vpop.f32.mrf.mxu0
        %v2642 = vadd.f32 %v2547, %v2641
        %v2643 = vand.u32 %v1660, 4294901760
        %v2644 = vsub.f32 %v1660, %v2643
        %2645 = vmatmul.f32.gmra.mxu0 %v2644
        %v2646 = vpop.f32.mrf.mxu0
        %v2647 = vadd.f32 %v2551, %v2646
        %v2648 = vand.u32 %v1663, 4294901760
        %v2649 = vsub.f32 %v1663, %v2648
        %2650 = vmatmul.f32.gmra.mxu0 %v2649
        %v2651 = vpop.f32.mrf.mxu0
        %v2652 = vadd.f32 %v2555, %v2651
        %v2653 = vand.u32 %v1666, 4294901760
        %v2654 = vsub.f32 %v1666, %v2653
        %2655 = vmatmul.f32.gmra.mxu0 %v2654
        %v2656 = vpop.f32.mrf.mxu0
        %v2657 = vadd.f32 %v2559, %v2656
        %v2658 = vand.u32 %v1669, 4294901760
        %v2659 = vsub.f32 %v1669, %v2658
        %2660 = vmatmul.f32.gmra.mxu0 %v2659
        %v2661 = vpop.f32.mrf.mxu0
        %v2662 = vadd.f32 %v2563, %v2661
        %v2663 = vand.u32 %v1672, 4294901760
        %v2664 = vsub.f32 %v1672, %v2663
        %2665 = vmatmul.f32.gmra.mxu0 %v2664
        %v2666 = vpop.f32.mrf.mxu0
        %v2667 = vadd.f32 %v2567, %v2666
        %v2668 = vand.u32 %v1675, 4294901760
        %v2669 = vsub.f32 %v1675, %v2668
        %2670 = vmatmul.f32.gmra.mxu0 %v2669
        %v2671 = vpop.f32.mrf.mxu0
        %v2672 = vadd.f32 %v2571, %v2671
        %v2673 = vand.u32 %v1678, 4294901760
        %v2674 = vsub.f32 %v1678, %v2673
        %2675 = vmatmul.f32.gmra.mxu0 %v2674
        %v2676 = vpop.f32.mrf.mxu0
        %v2677 = vadd.f32 %v2575, %v2676
        %v2678 = vand.u32 %v1681, 4294901760
        %v2679 = vsub.f32 %v1681, %v2678
        %2680 = vmatmul.f32.gmra.mxu0 %v2679
        %v2681 = vpop.f32.mrf.mxu0
        %v2682 = vadd.f32 %v2579, %v2681
        %v2683 = vand.u32 %v1684, 4294901760
        %v2684 = vsub.f32 %v1684, %v2683
        %2685 = vmatmul.f32.gmra.mxu0 %v2684
        %v2686 = vpop.f32.mrf.mxu0
        %v2687 = vadd.f32 %v2583, %v2686
        %v2688 = vand.u32 %v1687, 4294901760
        %v2689 = vsub.f32 %v1687, %v2688
        %2690 = vmatmul.f32.gmra.mxu0 %v2689
        %v2691 = vpop.f32.mrf.mxu0
        %v2692 = vadd.f32 %v2587, %v2691
        %2693 = vdwg.mxu0
        %2694 = vmatpush.msra.mxu0 0.0
        %2695 = vmatpush.msra.mxu0 0.0
        %2696 = vmatpush.msra.mxu0 0.0
        %2697 = vmatpush.msra.mxu0 0.0
        %2698 = vmatpush.msra.mxu0 0.0
        %2699 = vmatpush.msra.mxu0 0.0
        %2700 = vmatpush.msra.mxu0 0.0
        %2701 = vmatpush.msra.mxu0 0.0
        %2702 = vmatpush.msra.mxu0 0.0
        %2703 = vmatpush.msra.mxu0 0.0
        %2704 = vmatpush.msra.mxu0 0.0
        %2705 = vmatpush.msra.mxu0 0.0
        %v2706 = vand.u32 %v328, 4294901760
        %2707 = vmatpush.msra.mxu0 %v2706
        %v2708 = vand.u32 %v326, 4294901760
        %2709 = vmatpush.msra.mxu0 %v2708
        %v2710 = vand.u32 %v324, 4294901760
        %2711 = vmatpush.msra.mxu0 %v2710
        %v2712 = vand.u32 %v322, 4294901760
        %2713 = vmatpush.msra.mxu0 %v2712
        %v2714 = vand.u32 %v1642, 4294901760
        %v2715 = vsub.f32 %v1642, %v2714
        %v2716 = vand.u32 %v2715, 4294901760
        %2717 = vmatmul.f32.gmra.mxu0 %v2716
        %v2718 = vpop.f32.mrf.mxu0
        %v2719 = vadd.f32 %v2617, %v2718
        %v2720 = vand.u32 %v1645, 4294901760
        %v2721 = vsub.f32 %v1645, %v2720
        %v2722 = vand.u32 %v2721, 4294901760
        %2723 = vmatmul.f32.gmra.mxu0 %v2722
        %v2724 = vpop.f32.mrf.mxu0
        %v2725 = vadd.f32 %v2622, %v2724
        %v2726 = vand.u32 %v1648, 4294901760
        %v2727 = vsub.f32 %v1648, %v2726
        %v2728 = vand.u32 %v2727, 4294901760
        %2729 = vmatmul.f32.gmra.mxu0 %v2728
        %v2730 = vpop.f32.mrf.mxu0
        %v2731 = vadd.f32 %v2627, %v2730
        %v2732 = vand.u32 %v1651, 4294901760
        %v2733 = vsub.f32 %v1651, %v2732
        %v2734 = vand.u32 %v2733, 4294901760
        %2735 = vmatmul.f32.gmra.mxu0 %v2734
        %v2736 = vpop.f32.mrf.mxu0
        %v2737 = vadd.f32 %v2632, %v2736
        %v2738 = vand.u32 %v1654, 4294901760
        %v2739 = vsub.f32 %v1654, %v2738
        %v2740 = vand.u32 %v2739, 4294901760
        %2741 = vmatmul.f32.gmra.mxu0 %v2740
        %v2742 = vpop.f32.mrf.mxu0
        %v2743 = vadd.f32 %v2637, %v2742
        %v2744 = vand.u32 %v1657, 4294901760
        %v2745 = vsub.f32 %v1657, %v2744
        %v2746 = vand.u32 %v2745, 4294901760
        %2747 = vmatmul.f32.gmra.mxu0 %v2746
        %v2748 = vpop.f32.mrf.mxu0
        %v2749 = vadd.f32 %v2642, %v2748
        %v2750 = vand.u32 %v1660, 4294901760
        %v2751 = vsub.f32 %v1660, %v2750
        %v2752 = vand.u32 %v2751, 4294901760
        %2753 = vmatmul.f32.gmra.mxu0 %v2752
        %v2754 = vpop.f32.mrf.mxu0
        %v2755 = vadd.f32 %v2647, %v2754
        %v2756 = vand.u32 %v1663, 4294901760
        %v2757 = vsub.f32 %v1663, %v2756
        %v2758 = vand.u32 %v2757, 4294901760
        %2759 = vmatmul.f32.gmra.mxu0 %v2758
        %v2760 = vpop.f32.mrf.mxu0
        %v2761 = vadd.f32 %v2652, %v2760
        %v2762 = vand.u32 %v1666, 4294901760
        %v2763 = vsub.f32 %v1666, %v2762
        %v2764 = vand.u32 %v2763, 4294901760
        %2765 = vmatmul.f32.gmra.mxu0 %v2764
        %v2766 = vpop.f32.mrf.mxu0
        %v2767 = vadd.f32 %v2657, %v2766
        %v2768 = vand.u32 %v1669, 4294901760
        %v2769 = vsub.f32 %v1669, %v2768
        %v2770 = vand.u32 %v2769, 4294901760
        %2771 = vmatmul.f32.gmra.mxu0 %v2770
        %v2772 = vpop.f32.mrf.mxu0
        %v2773 = vadd.f32 %v2662, %v2772
        %v2774 = vand.u32 %v1672, 4294901760
        %v2775 = vsub.f32 %v1672, %v2774
        %v2776 = vand.u32 %v2775, 4294901760
        %2777 = vmatmul.f32.gmra.mxu0 %v2776
        %v2778 = vpop.f32.mrf.mxu0
        %v2779 = vadd.f32 %v2667, %v2778
        %v2780 = vand.u32 %v1675, 4294901760
        %v2781 = vsub.f32 %v1675, %v2780
        %v2782 = vand.u32 %v2781, 4294901760
        %2783 = vmatmul.f32.gmra.mxu0 %v2782
        %v2784 = vpop.f32.mrf.mxu0
        %v2785 = vadd.f32 %v2672, %v2784
        %v2786 = vand.u32 %v1678, 4294901760
        %v2787 = vsub.f32 %v1678, %v2786
        %v2788 = vand.u32 %v2787, 4294901760
        %2789 = vmatmul.f32.gmra.mxu0 %v2788
        %v2790 = vpop.f32.mrf.mxu0
        %v2791 = vadd.f32 %v2677, %v2790
        %v2792 = vand.u32 %v1681, 4294901760
        %v2793 = vsub.f32 %v1681, %v2792
        %v2794 = vand.u32 %v2793, 4294901760
        %2795 = vmatmul.f32.gmra.mxu0 %v2794
        %v2796 = vpop.f32.mrf.mxu0
        %v2797 = vadd.f32 %v2682, %v2796
        %v2798 = vand.u32 %v1684, 4294901760
        %v2799 = vsub.f32 %v1684, %v2798
        %v2800 = vand.u32 %v2799, 4294901760
        %2801 = vmatmul.f32.gmra.mxu0 %v2800
        %v2802 = vpop.f32.mrf.mxu0
        %v2803 = vadd.f32 %v2687, %v2802
        %v2804 = vand.u32 %v1687, 4294901760
        %v2805 = vsub.f32 %v1687, %v2804
        %v2806 = vand.u32 %v2805, 4294901760
        %2807 = vmatmul.f32.gmra.mxu0 %v2806
        %v2808 = vpop.f32.mrf.mxu0
        %v2809 = vadd.f32 %v2692, %v2808
        %2810 = vdwg.mxu0
        %2811 = vmatpush.msra.mxu0 0.0
        %2812 = vmatpush.msra.mxu0 0.0
        %2813 = vmatpush.msra.mxu0 0.0
        %2814 = vmatpush.msra.mxu0 0.0
        %2815 = vmatpush.msra.mxu0 0.0
        %2816 = vmatpush.msra.mxu0 0.0
        %2817 = vmatpush.msra.mxu0 0.0
        %2818 = vmatpush.msra.mxu0 0.0
        %2819 = vmatpush.msra.mxu0 0.0
        %2820 = vmatpush.msra.mxu0 0.0
        %2821 = vmatpush.msra.mxu0 0.0
        %2822 = vmatpush.msra.mxu0 0.0
        %v2823 = vand.u32 %v328, 4294901760
        %v2824 = vsub.f32 %v328, %v2823
        %v2825 = vand.u32 %v2824, 4294901760
        %2826 = vmatpush.msra.mxu0 %v2825
        %v2827 = vand.u32 %v326, 4294901760
        %v2828 = vsub.f32 %v326, %v2827
        %v2829 = vand.u32 %v2828, 4294901760
        %2830 = vmatpush.msra.mxu0 %v2829
        %v2831 = vand.u32 %v324, 4294901760
        %v2832 = vsub.f32 %v324, %v2831
        %v2833 = vand.u32 %v2832, 4294901760
        %2834 = vmatpush.msra.mxu0 %v2833
        %v2835 = vand.u32 %v322, 4294901760
        %v2836 = vsub.f32 %v322, %v2835
        %v2837 = vand.u32 %v2836, 4294901760
        %2838 = vmatpush.msra.mxu0 %v2837
        %v2839 = vand.u32 %v1642, 4294901760
        %2840 = vmatmul.f32.gmra.mxu0 %v2839
        %v2841 = vpop.f32.mrf.mxu0
        %v2842 = vadd.f32 %v2719, %v2841
        %v2843 = vand.u32 %v1645, 4294901760
        %2844 = vmatmul.f32.gmra.mxu0 %v2843
        %v2845 = vpop.f32.mrf.mxu0
        %v2846 = vadd.f32 %v2725, %v2845
        %v2847 = vand.u32 %v1648, 4294901760
        %2848 = vmatmul.f32.gmra.mxu0 %v2847
        %v2849 = vpop.f32.mrf.mxu0
        %v2850 = vadd.f32 %v2731, %v2849
        %v2851 = vand.u32 %v1651, 4294901760
        %2852 = vmatmul.f32.gmra.mxu0 %v2851
        %v2853 = vpop.f32.mrf.mxu0
        %v2854 = vadd.f32 %v2737, %v2853
        %v2855 = vand.u32 %v1654, 4294901760
        %2856 = vmatmul.f32.gmra.mxu0 %v2855
        %v2857 = vpop.f32.mrf.mxu0
        %v2858 = vadd.f32 %v2743, %v2857
        %v2859 = vand.u32 %v1657, 4294901760
        %2860 = vmatmul.f32.gmra.mxu0 %v2859
        %v2861 = vpop.f32.mrf.mxu0
        %v2862 = vadd.f32 %v2749, %v2861
        %v2863 = vand.u32 %v1660, 4294901760
        %2864 = vmatmul.f32.gmra.mxu0 %v2863
        %v2865 = vpop.f32.mrf.mxu0
        %v2866 = vadd.f32 %v2755, %v2865
        %v2867 = vand.u32 %v1663, 4294901760
        %2868 = vmatmul.f32.gmra.mxu0 %v2867
        %v2869 = vpop.f32.mrf.mxu0
        %v2870 = vadd.f32 %v2761, %v2869
        %v2871 = vand.u32 %v1666, 4294901760
        %2872 = vmatmul.f32.gmra.mxu0 %v2871
        %v2873 = vpop.f32.mrf.mxu0
        %v2874 = vadd.f32 %v2767, %v2873
        %v2875 = vand.u32 %v1669, 4294901760
        %2876 = vmatmul.f32.gmra.mxu0 %v2875
        %v2877 = vpop.f32.mrf.mxu0
        %v2878 = vadd.f32 %v2773, %v2877
        %v2879 = vand.u32 %v1672, 4294901760
        %2880 = vmatmul.f32.gmra.mxu0 %v2879
        %v2881 = vpop.f32.mrf.mxu0
        %v2882 = vadd.f32 %v2779, %v2881
        %v2883 = vand.u32 %v1675, 4294901760
        %2884 = vmatmul.f32.gmra.mxu0 %v2883
        %v2885 = vpop.f32.mrf.mxu0
        %v2886 = vadd.f32 %v2785, %v2885
        %v2887 = vand.u32 %v1678, 4294901760
        %2888 = vmatmul.f32.gmra.mxu0 %v2887
        %v2889 = vpop.f32.mrf.mxu0
        %v2890 = vadd.f32 %v2791, %v2889
        %v2891 = vand.u32 %v1681, 4294901760
        %2892 = vmatmul.f32.gmra.mxu0 %v2891
        %v2893 = vpop.f32.mrf.mxu0
        %v2894 = vadd.f32 %v2797, %v2893
        %v2895 = vand.u32 %v1684, 4294901760
        %2896 = vmatmul.f32.gmra.mxu0 %v2895
        %v2897 = vpop.f32.mrf.mxu0
        %v2898 = vadd.f32 %v2803, %v2897
        %v2899 = vand.u32 %v1687, 4294901760
        %2900 = vmatmul.f32.gmra.mxu0 %v2899
        %v2901 = vpop.f32.mrf.mxu0
        %v2902 = vadd.f32 %v2809, %v2901
        %2903 = vdwg.mxu0
        %2904 = vmatpush.msra.mxu0 0.0
        %2905 = vmatpush.msra.mxu0 0.0
        %2906 = vmatpush.msra.mxu0 0.0
        %2907 = vmatpush.msra.mxu0 0.0
        %2908 = vmatpush.msra.mxu0 0.0
        %2909 = vmatpush.msra.mxu0 0.0
        %2910 = vmatpush.msra.mxu0 0.0
        %2911 = vmatpush.msra.mxu0 0.0
        %2912 = vmatpush.msra.mxu0 0.0
        %2913 = vmatpush.msra.mxu0 0.0
        %2914 = vmatpush.msra.mxu0 0.0
        %2915 = vmatpush.msra.mxu0 0.0
        %v2916 = vand.u32 %v328, 4294901760
        %2917 = vmatpush.msra.mxu0 %v2916
        %v2918 = vand.u32 %v326, 4294901760
        %2919 = vmatpush.msra.mxu0 %v2918
        %v2920 = vand.u32 %v324, 4294901760
        %2921 = vmatpush.msra.mxu0 %v2920
        %v2922 = vand.u32 %v322, 4294901760
        %2923 = vmatpush.msra.mxu0 %v2922
        %v2924 = vand.u32 %v1642, 4294901760
        %2925 = vmatmul.f32.gmra.mxu0 %v2924
        %v2926 = vpop.f32.mrf.mxu0
        %v2927 = vadd.f32 %v2842, %v2926
        %v2928 = vand.u32 %v1645, 4294901760
        %2929 = vmatmul.f32.gmra.mxu0 %v2928
        %v2930 = vpop.f32.mrf.mxu0
        %v2931 = vadd.f32 %v2846, %v2930
        %v2932 = vand.u32 %v1648, 4294901760
        %2933 = vmatmul.f32.gmra.mxu0 %v2932
        %v2934 = vpop.f32.mrf.mxu0
        %v2935 = vadd.f32 %v2850, %v2934
        %v2936 = vand.u32 %v1651, 4294901760
        %2937 = vmatmul.f32.gmra.mxu0 %v2936
        %v2938 = vpop.f32.mrf.mxu0
        %v2939 = vadd.f32 %v2854, %v2938
        %v2940 = vand.u32 %v1654, 4294901760
        %2941 = vmatmul.f32.gmra.mxu0 %v2940
        %v2942 = vpop.f32.mrf.mxu0
        %v2943 = vadd.f32 %v2858, %v2942
        %v2944 = vand.u32 %v1657, 4294901760
        %2945 = vmatmul.f32.gmra.mxu0 %v2944
        %v2946 = vpop.f32.mrf.mxu0
        %v2947 = vadd.f32 %v2862, %v2946
        %v2948 = vand.u32 %v1660, 4294901760
        %2949 = vmatmul.f32.gmra.mxu0 %v2948
        %v2950 = vpop.f32.mrf.mxu0
        %v2951 = vadd.f32 %v2866, %v2950
        %v2952 = vand.u32 %v1663, 4294901760
        %2953 = vmatmul.f32.gmra.mxu0 %v2952
        %v2954 = vpop.f32.mrf.mxu0
        %v2955 = vadd.f32 %v2870, %v2954
        %v2956 = vand.u32 %v1666, 4294901760
        %2957 = vmatmul.f32.gmra.mxu0 %v2956
        %v2958 = vpop.f32.mrf.mxu0
        %v2959 = vadd.f32 %v2874, %v2958
        %v2960 = vand.u32 %v1669, 4294901760
        %2961 = vmatmul.f32.gmra.mxu0 %v2960
        %v2962 = vpop.f32.mrf.mxu0
        %v2963 = vadd.f32 %v2878, %v2962
        %v2964 = vand.u32 %v1672, 4294901760
        %2965 = vmatmul.f32.gmra.mxu0 %v2964
        %v2966 = vpop.f32.mrf.mxu0
        %v2967 = vadd.f32 %v2882, %v2966
        %v2968 = vand.u32 %v1675, 4294901760
        %2969 = vmatmul.f32.gmra.mxu0 %v2968
        %v2970 = vpop.f32.mrf.mxu0
        %v2971 = vadd.f32 %v2886, %v2970
        %v2972 = vand.u32 %v1678, 4294901760
        %2973 = vmatmul.f32.gmra.mxu0 %v2972
        %v2974 = vpop.f32.mrf.mxu0
        %v2975 = vadd.f32 %v2890, %v2974
        %v2976 = vand.u32 %v1681, 4294901760
        %2977 = vmatmul.f32.gmra.mxu0 %v2976
        %v2978 = vpop.f32.mrf.mxu0
        %v2979 = vadd.f32 %v2894, %v2978
        %v2980 = vand.u32 %v1684, 4294901760
        %2981 = vmatmul.f32.gmra.mxu0 %v2980
        %v2982 = vpop.f32.mrf.mxu0
        %v2983 = vadd.f32 %v2898, %v2982
        %v2984 = vand.u32 %v1687, 4294901760
        %2985 = vmatmul.f32.gmra.mxu0 %v2984
        %v2986 = vpop.f32.mrf.mxu0
        %v2987 = vadd.f32 %v2902, %v2986
        %2988 = vdwg.mxu0
        %v2989 = vand.u32 2147483647, %v2277
        %v2990 = vand.u32 2147483647, %v2927
        %v2991 = vand.u32 2147483647, %v2281
        %v2992 = vand.u32 2147483647, %v2931
        %v2993 = vand.u32 2147483647, %v2285
        %v2994 = vand.u32 2147483647, %v2935
        %v2995 = vand.u32 2147483647, %v2289
        %v2996 = vand.u32 2147483647, %v2939
        %v2997 = vand.u32 2147483647, %v2293
        %v2998 = vand.u32 2147483647, %v2943
        %v2999 = vand.u32 2147483647, %v2297
        %v3000 = vand.u32 2147483647, %v2947
        %v3001 = vand.u32 2147483647, %v2301
        %v3002 = vand.u32 2147483647, %v2951
        %v3003 = vand.u32 2147483647, %v2305
        %v3004 = vand.u32 2147483647, %v2955
        %v3005 = vand.u32 2147483647, %v2309
        %v3006 = vand.u32 2147483647, %v2959
        %v3007 = vand.u32 2147483647, %v2313
        %v3008 = vand.u32 2147483647, %v2963
        %v3009 = vand.u32 2147483647, %v2317
        %v3010 = vand.u32 2147483647, %v2967
        %v3011 = vand.u32 2147483647, %v2321
        %v3012 = vand.u32 2147483647, %v2971
        %v3013 = vand.u32 2147483647, %v2325
        %v3014 = vand.u32 2147483647, %v2975
        %v3015 = vand.u32 2147483647, %v2329
        %v3016 = vand.u32 2147483647, %v2979
        %v3017 = vand.u32 2147483647, %v2333
        %v3018 = vand.u32 2147483647, %v2983
        %v3019 = vand.u32 2147483647, %v2337
        %v3020 = vand.u32 2147483647, %v2987
        %v3021 = vadd.f32 %v2989, %v2991
        %v3022 = vadd.f32 %v3021, %v2993
        %v3023 = vadd.f32 %v3022, %v2995
        %v3024 = vadd.f32 %v3023, %v2997
        %v3025 = vadd.f32 %v3024, %v2999
        %v3026 = vadd.f32 %v3025, %v3001
        %v3027 = vadd.f32 %v3026, %v3003
        %v3028 = vadd.f32 %v3027, %v3005
        %v3029 = vadd.f32 %v3028, %v3007
        %v3030 = vadd.f32 %v3029, %v3009
        %v3031 = vadd.f32 %v3030, %v3011
        %v3032 = vadd.f32 %v3031, %v3013
        %v3033 = vadd.f32 %v3032, %v3015
        %v3034 = vadd.f32 %v3033, %v3017
        %v3035 = vadd.f32 %v3034, %v3019
        %v3036 = vrot.slane %v3035, 4
        %v3037 = vadd.f32 %v3035, %v3036
        %v3038 = vrot.slane %v3037, 2
        %v3039 = vadd.f32 %v3037, %v3038
        %v3040 = vrot.slane %v3039, 1
        %v3041 = vadd.f32 %v3039, %v3040
        %v3042 = vadd.f32 %v2990, %v2992
        %v3043 = vadd.f32 %v3042, %v2994
        %v3044 = vadd.f32 %v3043, %v2996
        %v3045 = vadd.f32 %v3044, %v2998
        %v3046 = vadd.f32 %v3045, %v3000
        %v3047 = vadd.f32 %v3046, %v3002
        %v3048 = vadd.f32 %v3047, %v3004
        %v3049 = vadd.f32 %v3048, %v3006
        %v3050 = vadd.f32 %v3049, %v3008
        %v3051 = vadd.f32 %v3050, %v3010
        %v3052 = vadd.f32 %v3051, %v3012
        %v3053 = vadd.f32 %v3052, %v3014
        %v3054 = vadd.f32 %v3053, %v3016
        %v3055 = vadd.f32 %v3054, %v3018
        %v3056 = vadd.f32 %v3055, %v3020
        %v3057 = vrot.slane %v3056, 4
        %v3058 = vadd.f32 %v3056, %v3057
        %v3059 = vrot.slane %v3058, 2
        %v3060 = vadd.f32 %v3058, %v3059
        %v3061 = vrot.slane %v3060, 1
        %v3062 = vadd.f32 %v3060, %v3061
        %v3065 = vrot.slane %v3062, 7
        %vm3066 = vcmask 1040384
        %v3067 = vsel %vm3066, %v3041, %v3065
        %v3069 = vlaneseq
        %vm3070 = vcmp.ge.s32.totalorder %v3069, 0
        %vm3071 = vcmp.lt.s32.totalorder %v3069, 256
        %vm3072 = vmand %vm3070, %vm3071
        %3073 = vst.msk [vmem:[%s244] sm:$0x3] %vm3072, %v3067
        %s3074 = sand.u32 %s147, 1
        %s3075 = scalar_lea.sflag [#allocation3], %s3074
        %s3076 = sand.u32 %s147, 1
        %s3077 = smul.addr %s3076, 2
        %s3078 = scalar_lea.vmem [#allocation2], %s3077
        // Predicated region
        $region41: #{tpu_custom_call.1} parent=39 // pred_check
          %p3079 = pneg %p157
        $region42: #{tpu_custom_call.1} parent=39 // pred_check_branch
          %3081 = sbr.rel (%p3079) target = $region44
        $region43: #{tpu_custom_call.1} parent=39 // pred_region
          %s3082 = smul.u32 2, %s19
          %3084 = vsyncadd %s3075, 0
          %s3085 = scalar_lea.hbm %s5, %s3082
          %s3087 = sshll.u32 %s3078, 4
          %s3088 = int_to_ptr.vmem [resolvable:$true] %s3087
          %s3089 = sshll.u32 %s3085, 4
          %s3090 = int_to_ptr.hbm [resolvable:$true] %s3089
          %3092 = dma.vmem_to_hbm [thread:$0]  %s3088, 32, %s3090, %s3075
        $region44: #{tpu_custom_call.1} parent=39 // pred_fallthru
          _
      $region40: #{tpu_custom_call.1} parent=5 // pred_fallthru
        _
      %p3093 = scmp.le.s32.totalorder 2, %s14
      // Predicated region
      $region45: #{tpu_custom_call.1} parent=5 // pred_check
        %p3094 = pneg %p3093
      $region46: #{tpu_custom_call.1} parent=5 // pred_check_branch
        %3096 = sbr.rel (%p3094) target = $region48
      $region47: #{tpu_custom_call.1} parent=5 // pred_region
        %s3097 = ssub.s32 %s14, 2
        // Predicated region
        $region49: #{tpu_custom_call.1} parent=47 // pred_check
          %p3098 = pneg %p163
        $region50: #{tpu_custom_call.1} parent=47 // pred_check_branch
          %3100 = sbr.rel (%p3098) target = $region52
        $region51: #{tpu_custom_call.1} parent=47 // pred_region
          %s3101 = sand.u32 %s148, 1
          %s3102 = scalar_lea.sflag [#allocation3], %s3101
          %s3103 = sand.u32 %s148, 1
          %s3104 = smul.addr %s3103, 2
          %s3105 = scalar_lea.vmem [#allocation2], %s3104
          %3107 = dma.done %s3102, 32
        $region52: #{tpu_custom_call.1} parent=47 // pred_fallthru
          _
      $region48: #{tpu_custom_call.1} parent=5 // pred_fallthru
        _
    $region6: #{tpu_custom_call.1} parent=1 // loop_footer
      %s18 = sadd.s32 1, %s14
    $region7: #{tpu_custom_call.1} parent=1 // loop_footer_branch
      %13 = sbr.rel target = $region3
    $region8: #{tpu_custom_call.1} parent=1 // loop_exit
      _
    %3108 = vsyncpa [#allocation3], 1
    %s3109 = scalar_lea.sflag [#allocation3], 1
    %3110 = vsyncpa %s3109, 1

</llo_original>
